<compile_context>
chip_gen: v5e
topology: v5e:2x2
jax: 0.10.0
libtpu: 0.0.40
codegen_flags: <defaults>
</compile_context>

<pallas_src>
import functools
import math

import jax
import jax.numpy as jnp
from jax.experimental import pallas as pl
from jax.experimental.pallas import tpu as pltpu

# ---------------- model hyper-parameters (small, BERT-like) ----------------
BATCH = 2
SEQ = 8
DIM = 32
NUM_HEADS = 4
INNER = 64
VOCAB = 128
MAXLEN = 16
NUM_TYPES = 2
NUM_LAYERS = 2


# ---------------------------- helpers ----------------------------
def _log2(x):
    # shift-based masks in the kernel require power-of-two sizes; fail loudly.
    assert x > 0 and (x & (x - 1)) == 0, f"{x} must be a power of two"
    return x.bit_length() - 1


def _gelu(x):
    # qelos / BERT tanh-approximation GeLU (f32 elementwise; v5e has no bf16 VPU/EUP)
    c = 0.7978845608028654  # sqrt(2/pi)
    return 0.5 * x * (1.0 + jnp.tanh(c * (x + 0.044715 * x * x * x)))


def _layer_norm(x, w, b, eps):
    mean = jnp.mean(x, axis=-1, keepdims=True)
    var = jnp.mean((x - mean) ** 2, axis=-1, keepdims=True)
    return (x - mean) * jax.lax.rsqrt(var + eps) * w + b


# ------------------------------ fused kernel ------------------------------
def bert_mlm_fused_kernel(
        ids_ref, tids_ref, mask_ref,
        wemb_ref, pemb_ref, temb_ref, elnw_ref, elnb_ref,
        wqkv_ref, bqkv_ref, wo_ref, bo_ref, ln1w_ref, ln1b_ref,
        wa_ref, ba_ref, wb_ref, bb_ref, ln2w_ref, ln2b_ref,
        hwt_ref, hbt_ref, hlnw_ref, hlnb_ref, hwo_ref, hbo_ref,
        out_ref, *, batch, seq, num_heads, num_layers):
    N = batch * seq
    V, D = wemb_ref.shape
    M = pemb_ref.shape[0]
    T = temb_ref.shape[0]
    dh = D // num_heads
    HN = num_heads * N
    f32 = jnp.float32

    sh_s, sh_n, sh_dh = _log2(seq), _log2(N), _log2(dh)

    # ---- constants: built once, hoisted out of the layer loop (no re-broadcast) ----
    # head mask for the sublane-packed Q replica: HM[h*N+q, d] = [d // dh == h]
    hm_row_head = jax.lax.shift_right_logical(
        jax.lax.broadcasted_iota(jnp.int32, (HN, D), 0), sh_n)
    hm_col_head = jax.lax.shift_right_logical(
        jax.lax.broadcasted_iota(jnp.int32, (HN, D), 1), sh_dh)
    head_mask = (hm_row_head == hm_col_head).astype(f32)              # (H*N, D)

    # per-head output-column masks used to merge the context heads
    lane_head = jax.lax.shift_right_logical(
        jax.lax.broadcasted_iota(jnp.int32, (1, D), 1), sh_dh)        # (1, D)
    col_masks = [(lane_head == h).astype(f32) for h in range(num_heads)]

    # packed additive attention bias (H*N, N): 0 where same batch element AND key
    # kept, else -1e9 (matches the usual torch -1e9 masking behaviour).
    r_iota = jax.lax.broadcasted_iota(jnp.int32, (HN, N), 0)
    k_iota = jax.lax.broadcasted_iota(jnp.int32, (HN, N), 1)
    q_batch = jax.lax.shift_right_logical(r_iota & (N - 1), sh_s)     # ((r % N) // S)
    k_batch = jax.lax.shift_right_logical(k_iota, sh_s)               # (k // S)
    key_keep = mask_ref[...] > 0                                      # (1, N), bcast over rows
    bias = jnp.where((q_batch == k_batch) & key_keep, 0.0, -1e9).astype(f32)

    # ---- BERTEmbeddings: exact one-hot gathers + add + LayerNorm(eps=1e-12) ----
    ids = ids_ref[...]                                                # (N, 1) int32
    oh_word = (ids == jax.lax.broadcasted_iota(jnp.int32, (1, V), 1)).astype(f32)
    emb = jnp.dot(oh_word, wemb_ref[...], preferred_element_type=f32)  # (N, D)

    tok_pos = jax.lax.broadcasted_iota(jnp.int32, (N, 1), 0) & (seq - 1)   # pos id = n % S
    oh_pos = (tok_pos == jax.lax.broadcasted_iota(jnp.int32, (1, M), 1)).astype(f32)
    emb = emb + jnp.dot(oh_pos, pemb_ref[...], preferred_element_type=f32)

    tids = tids_ref[...]                                              # (N, 1) int32
    oh_type = (tids == jax.lax.broadcasted_iota(jnp.int32, (1, T), 1)).astype(f32)
    emb = emb + jnp.dot(oh_type, temb_ref[...], preferred_element_type=f32)

    x = _layer_norm(emb, elnw_ref[...], elnb_ref[...], 1e-12)         # (N, D)

    # ---- TransformerEncoder blocks (post-LN BERT, dropout = identity) ----
    for l in range(num_layers):
        # fused QKV projection (1/sqrt(dh) already folded into the Q columns at init)
        qkv = jnp.dot(x, wqkv_ref[l], preferred_element_type=f32) + bqkv_ref[l]   # (N, 3D)
        q = qkv[:, 0:D]
        k = qkv[:, D:2 * D]
        v = qkv[:, 2 * D:3 * D]

        # sublane-packed scores: row h*N+q holds head h's scores for query q
        q_rep = jnp.concatenate([q] * num_heads, axis=0) * head_mask  # (H*N, D)
        s = jnp.einsum('rd,kd->rk', q_rep, k,
                       preferred_element_type=f32)                    # (H*N, N)
        s = s + bias
        s = s - jnp.max(s, axis=-1, keepdims=True)
        p = jnp.exp(s)
        p = p / jnp.sum(p, axis=-1, keepdims=True)                    # exact softmax

        # context: one packed matmul, then merge heads with aligned sublane slices
        big = jnp.dot(p, v, preferred_element_type=f32)               # (H*N, D)
        ctx = col_masks[0] * big[0:N, :]
        for h in range(1, num_heads):
            ctx = ctx + col_masks[h] * big[h * N:(h + 1) * N, :]      # (N, D)

        attn = jnp.dot(ctx, wo_ref[l], preferred_element_type=f32) + bo_ref[l]
        h1 = _layer_norm(x + attn, ln1w_ref[l], ln1b_ref[l], 1e-5)

        ff = jnp.dot(h1, wa_ref[l], preferred_element_type=f32) + ba_ref[l]
        ff = _gelu(ff)
        ff = jnp.dot(ff, wb_ref[l], preferred_element_type=f32) + bb_ref[l]
        x = _layer_norm(h1 + ff, ln2w_ref[l], ln2b_ref[l], 1e-5)

    # ---- BERTMLM_Head: Linear -> GeLU -> LayerNorm(1e-10) -> Linear(vocab) ----
    hdd = jnp.dot(x, hwt_ref[...], preferred_element_type=f32) + hbt_ref[...]
    hdd = _gelu(hdd)
    hdd = _layer_norm(hdd, hlnw_ref[...], hlnb_ref[...], 1e-10)
    # (N, VOCAB) = (16, 128): lane-dense output store
    out_ref[...] = jnp.dot(hdd, hwo_ref[...],
                           preferred_element_type=f32) + hbo_ref[...]


# ------------------------------ wrapper ------------------------------
def bert_mlm_forward(params, input_ids, type_ids=None, mask=None):
    B, S = input_ids.shape
    if type_ids is None:
        type_ids = jnp.zeros_like(input_ids)
    if mask is None:
        mask = jnp.ones_like(input_ids)
    N = B * S

    # loud shape checks (review correctness note)
    assert S <= MAXLEN, "sequence length exceeds position-embedding table"
    assert DIM % NUM_HEADS == 0
    assert params['head_wo'].shape == (DIM, VOCAB)
    _log2(S), _log2(N), _log2(DIM // NUM_HEADS)   # power-of-two requirements

    ids = input_ids.reshape(N, 1).astype(jnp.int32)
    tids = type_ids.reshape(N, 1).astype(jnp.int32)
    mask_row = mask.reshape(1, N).astype(jnp.int32)

    args = (ids, tids, mask_row,
            params['word_emb'], params['pos_emb'], params['type_emb'],
            params['emb_lnw'], params['emb_lnb'],
            params['wqkv'], params['bqkv'], params['wo'], params['bo'],
            params['ln1w'], params['ln1b'],
            params['wa'], params['ba'], params['wb'], params['bb'],
            params['ln2w'], params['ln2b'],
            params['head_wt'], params['head_bt'], params['head_lnw'],
            params['head_lnb'], params['head_wo'], params['head_bo'])

    # advisory cost estimate so XLA schedules the custom call sensibly
    H = NUM_HEADS
    flops_emb = 2 * N * (VOCAB + MAXLEN + NUM_TYPES) * DIM
    flops_layer = (2 * N * DIM * 3 * DIM          # fused QKV
                   + 2 * H * N * DIM * N          # packed scores
                   + 2 * H * N * N * DIM          # packed context
                   + 2 * N * DIM * DIM            # Wo
                   + 2 * N * DIM * INNER          # FFN up
                   + 2 * N * INNER * DIM)         # FFN down
    flops_head = 2 * N * DIM * DIM + 2 * N * DIM * VOCAB
    flops = flops_emb + NUM_LAYERS * flops_layer + flops_head
    transcendentals = NUM_LAYERS * (H * N * N + N * INNER) + N * DIM
    bytes_accessed = int(sum(a.size * a.dtype.itemsize for a in args)
                         + N * VOCAB * 4)
    cost = pl.CostEstimate(flops=int(flops),
                           transcendentals=int(transcendentals),
                           bytes_accessed=bytes_accessed)

    # No grid: single kernel invocation, every operand resident in VMEM for the
    # whole call (no software-pipeline prologue / double-buffering).
    vmem = pl.BlockSpec(memory_space=pltpu.MemorySpace.VMEM)
    out = pl.pallas_call(
        functools.partial(bert_mlm_fused_kernel, batch=B, seq=S,
                          num_heads=NUM_HEADS, num_layers=NUM_LAYERS),
        out_shape=jax.ShapeDtypeStruct((N, VOCAB), jnp.float32),
        in_specs=[vmem] * len(args),
        out_specs=vmem,
        cost_estimate=cost,
    )(*args)
    return out.reshape(B, S, VOCAB)


# ------------------------------ parameter init ------------------------------
def init_params(key):
    def nrm(k, shape):
        return (jax.random.normal(k, shape) * 0.02).astype(jnp.float32)

    keys = iter(jax.random.split(key, 32))
    L = NUM_LAYERS
    scale = 1.0 / math.sqrt(DIM // NUM_HEADS)

    wqkv = nrm(next(keys), (L, DIM, 3 * DIM))
    bqkv = jnp.zeros((L, 1, 3 * DIM), jnp.float32)
    # fold the attention 1/sqrt(dh) scale into the Q columns (host-side, one time)
    wqkv = wqkv.at[:, :, :DIM].multiply(scale)
    bqkv = bqkv.at[:, :, :DIM].multiply(scale)

    params = {
        'word_emb': nrm(next(keys), (VOCAB, DIM)),
        'pos_emb': nrm(next(keys), (MAXLEN, DIM)),
        'type_emb': nrm(next(keys), (NUM_TYPES, DIM)),
        'emb_lnw': jnp.ones((1, DIM), jnp.float32),
        'emb_lnb': jnp.zeros((1, DIM), jnp.float32),
        # per-layer weights stacked along a leading layer axis; Q/K/V fused to (D, 3D)
        'wqkv': wqkv,
        'bqkv': bqkv,
        'wo': nrm(next(keys), (L, DIM, DIM)),
        'bo': jnp.zeros((L, 1, DIM), jnp.float32),
        'ln1w': jnp.ones((L, 1, DIM), jnp.float32),
        'ln1b': jnp.zeros((L, 1, DIM), jnp.float32),
        'wa': nrm(next(keys), (L, DIM, INNER)),
        'ba': jnp.zeros((L, 1, INNER), jnp.float32),
        'wb': nrm(next(keys), (L, INNER, DIM)),
        'bb': jnp.zeros((L, 1, DIM), jnp.float32),
        'ln2w': jnp.ones((L, 1, DIM), jnp.float32),
        'ln2b': jnp.zeros((L, 1, DIM), jnp.float32),
        # MLM head
        'head_wt': nrm(next(keys), (DIM, DIM)),
        'head_bt': jnp.zeros((1, DIM), jnp.float32),
        'head_lnw': jnp.ones((1, DIM), jnp.float32),
        'head_lnb': jnp.zeros((1, DIM), jnp.float32),
        'head_bo': jnp.zeros((1, VOCAB), jnp.float32),
    }
    # tied output projection (mirrors mlm_pred.out.weight = word_embeddings.weight);
    # snapshot tie — fine for this forward-only script.
    params['head_wo'] = params['word_emb'].T
    return params


if __name__ == "__main__":
    key = jax.random.PRNGKey(0)
    pkey, ikey = jax.random.split(key)
    params = init_params(pkey)

    input_ids = jax.random.randint(ikey, (BATCH, SEQ), 0, VOCAB, dtype=jnp.int32)

    forward = jax.jit(bert_mlm_forward)
    logits = forward(params, input_ids)   # typeids=None, mask=None defaults
    jax.block_until_ready(logits)

    assert logits.shape == (BATCH, SEQ, VOCAB)
    assert bool(jnp.all(jnp.isfinite(logits)))
    print("KERNEL_OK")
</pallas_src>

<mosaic_0001>
module attributes {stable_mosaic.version = 11 : i64} {
  func.func @bert_mlm_fused_kernel(%arg0: memref<16x1xi32, #tpu.memory_space<vmem>>, %arg1: memref<16x1xi32, #tpu.memory_space<vmem>>, %arg2: memref<1x16xi32, #tpu.memory_space<vmem>>, %arg3: memref<128x32xf32, #tpu.memory_space<vmem>>, %arg4: memref<16x32xf32, #tpu.memory_space<vmem>>, %arg5: memref<2x32xf32, #tpu.memory_space<vmem>>, %arg6: memref<1x32xf32, #tpu.memory_space<vmem>>, %arg7: memref<1x32xf32, #tpu.memory_space<vmem>>, %arg8: memref<2x32x96xf32, #tpu.memory_space<vmem>>, %arg9: memref<2x1x96xf32, #tpu.memory_space<vmem>>, %arg10: memref<2x32x32xf32, #tpu.memory_space<vmem>>, %arg11: memref<2x1x32xf32, #tpu.memory_space<vmem>>, %arg12: memref<2x1x32xf32, #tpu.memory_space<vmem>>, %arg13: memref<2x1x32xf32, #tpu.memory_space<vmem>>, %arg14: memref<2x32x64xf32, #tpu.memory_space<vmem>>, %arg15: memref<2x1x64xf32, #tpu.memory_space<vmem>>, %arg16: memref<2x64x32xf32, #tpu.memory_space<vmem>>, %arg17: memref<2x1x32xf32, #tpu.memory_space<vmem>>, %arg18: memref<2x1x32xf32, #tpu.memory_space<vmem>>, %arg19: memref<2x1x32xf32, #tpu.memory_space<vmem>>, %arg20: memref<32x32xf32, #tpu.memory_space<vmem>>, %arg21: memref<1x32xf32, #tpu.memory_space<vmem>>, %arg22: memref<1x32xf32, #tpu.memory_space<vmem>>, %arg23: memref<1x32xf32, #tpu.memory_space<vmem>>, %arg24: memref<32x128xf32, #tpu.memory_space<vmem>>, %arg25: memref<1x128xf32, #tpu.memory_space<vmem>>, %arg26: memref<16x128xf32, #tpu.memory_space<vmem>>) attributes {dimension_semantics = [], scalar_prefetch = 0 : i64, scratch_operands = 0 : i64, tpu.core_type = #tpu.core_type<tc>} {
    %0 = tpu.iota {dimensions = array<i32: 0>} : vector<64x32xi32>
    %c4_i32 = arith.constant 4 : i32
    %1 = vector.broadcast %c4_i32 : i32 to vector<64x32xi32>
    %2 = arith.shrui %0, %1 : vector<64x32xi32>
    %3 = tpu.iota {dimensions = array<i32: 1>} : vector<64x32xi32>
    %c3_i32 = arith.constant 3 : i32
    %4 = vector.broadcast %c3_i32 : i32 to vector<64x32xi32>
    %5 = arith.shrui %3, %4 : vector<64x32xi32>
    %6 = arith.cmpi eq, %2, %5 : vector<64x32xi32>
    %7 = arith.extui %6 : vector<64x32xi1> to vector<64x32xi32>
    %8 = arith.sitofp %7 : vector<64x32xi32> to vector<64x32xf32>
    %9 = tpu.iota {dimensions = array<i32: 1>} : vector<1x32xi32>
    %c3_i32_0 = arith.constant 3 : i32
    %10 = vector.broadcast %c3_i32_0 : i32 to vector<1x32xi32>
    %11 = arith.shrui %9, %10 : vector<1x32xi32>
    %c0_i32 = arith.constant 0 : i32
    %12 = vector.broadcast %c0_i32 : i32 to vector<1x32xi32>
    %13 = arith.cmpi eq, %11, %12 : vector<1x32xi32>
    %14 = arith.extui %13 : vector<1x32xi1> to vector<1x32xi32>
    %15 = arith.sitofp %14 : vector<1x32xi32> to vector<1x32xf32>
    %c1_i32 = arith.constant 1 : i32
    %16 = vector.broadcast %c1_i32 : i32 to vector<1x32xi32>
    %17 = arith.cmpi eq, %11, %16 : vector<1x32xi32>
    %18 = arith.extui %17 : vector<1x32xi1> to vector<1x32xi32>
    %19 = arith.sitofp %18 : vector<1x32xi32> to vector<1x32xf32>
    %c2_i32 = arith.constant 2 : i32
    %20 = vector.broadcast %c2_i32 : i32 to vector<1x32xi32>
    %21 = arith.cmpi eq, %11, %20 : vector<1x32xi32>
    %22 = arith.extui %21 : vector<1x32xi1> to vector<1x32xi32>
    %23 = arith.sitofp %22 : vector<1x32xi32> to vector<1x32xf32>
    %c3_i32_1 = arith.constant 3 : i32
    %24 = vector.broadcast %c3_i32_1 : i32 to vector<1x32xi32>
    %25 = arith.cmpi eq, %11, %24 : vector<1x32xi32>
    %26 = arith.extui %25 : vector<1x32xi1> to vector<1x32xi32>
    %27 = arith.sitofp %26 : vector<1x32xi32> to vector<1x32xf32>
    %28 = tpu.iota {dimensions = array<i32: 0>} : vector<64x16xi32>
    %29 = tpu.iota {dimensions = array<i32: 1>} : vector<64x16xi32>
    %c15_i32 = arith.constant 15 : i32
    %30 = vector.broadcast %c15_i32 : i32 to vector<64x16xi32>
    %31 = arith.andi %28, %30 : vector<64x16xi32>
    %c3_i32_2 = arith.constant 3 : i32
    %32 = vector.broadcast %c3_i32_2 : i32 to vector<64x16xi32>
    %33 = arith.shrui %31, %32 : vector<64x16xi32>
    %c3_i32_3 = arith.constant 3 : i32
    %34 = vector.broadcast %c3_i32_3 : i32 to vector<64x16xi32>
    %35 = arith.shrui %29, %34 : vector<64x16xi32>
    %c0 = arith.constant 0 : index
    %c0_4 = arith.constant 0 : index
    %36 = vector.load %arg2[%c0, %c0_4] : memref<1x16xi32, #tpu.memory_space<vmem>>, vector<1x16xi32>
    %c0_i32_5 = arith.constant 0 : i32
    %37 = vector.broadcast %c0_i32_5 : i32 to vector<1x16xi32>
    %38 = arith.cmpi sgt, %36, %37 : vector<1x16xi32>
    %39 = arith.cmpi eq, %33, %35 : vector<64x16xi32>
    %40 = vector.broadcast %38 : vector<1x16xi1> to vector<64x16xi1>
    %41 = arith.andi %39, %40 : vector<64x16xi1>
    %cst = arith.constant 0.000000e+00 : f32
    %cst_6 = arith.constant -1.000000e+09 : f32
    %42 = vector.broadcast %cst : f32 to vector<64x16xf32>
    %43 = vector.broadcast %cst_6 : f32 to vector<64x16xf32>
    %44 = arith.select %41, %42, %43 : vector<64x16xi1>, vector<64x16xf32>
    %c0_7 = arith.constant 0 : index
    %c0_8 = arith.constant 0 : index
    %45 = vector.load %arg0[%c0_7, %c0_8] : memref<16x1xi32, #tpu.memory_space<vmem>>, vector<16x1xi32>
    %46 = tpu.iota {dimensions = array<i32: 1>} : vector<1x128xi32>
    %47 = vector.broadcast %45 : vector<16x1xi32> to vector<16x128xi32>
    %48 = vector.broadcast %46 : vector<1x128xi32> to vector<16x128xi32>
    %49 = arith.cmpi eq, %47, %48 : vector<16x128xi32>
    %50 = arith.extui %49 : vector<16x128xi1> to vector<16x128xi32>
    %51 = arith.sitofp %50 : vector<16x128xi32> to vector<16x128xf32>
    %c0_9 = arith.constant 0 : index
    %c0_10 = arith.constant 0 : index
    %52 = vector.load %arg3[%c0_9, %c0_10] : memref<128x32xf32, #tpu.memory_space<vmem>>, vector<128x32xf32>
    %cst_11 = arith.constant dense<0.000000e+00> : vector<16x32xf32>
    %53 = tpu.matmul %51, %52, %cst_11 {dimension_numbers = #tpu.dot_dimension_numbers<[1], [0], [0], [1], [0, 0, 1, 1], [], []>} : vector<16x128xf32>, vector<128x32xf32>, vector<16x32xf32> -> vector<16x32xf32>
    %54 = tpu.iota {dimensions = array<i32: 0>} : vector<16x1xi32>
    %c7_i32 = arith.constant 7 : i32
    %55 = vector.broadcast %c7_i32 : i32 to vector<16x1xi32>
    %56 = arith.andi %54, %55 : vector<16x1xi32>
    %57 = tpu.iota {dimensions = array<i32: 1>} : vector<1x16xi32>
    %58 = vector.broadcast %56 : vector<16x1xi32> to vector<16x16xi32>
    %59 = vector.broadcast %57 : vector<1x16xi32> to vector<16x16xi32>
    %60 = arith.cmpi eq, %58, %59 : vector<16x16xi32>
    %61 = arith.extui %60 : vector<16x16xi1> to vector<16x16xi32>
    %62 = arith.sitofp %61 : vector<16x16xi32> to vector<16x16xf32>
    %c0_12 = arith.constant 0 : index
    %c0_13 = arith.constant 0 : index
    %63 = vector.load %arg4[%c0_12, %c0_13] : memref<16x32xf32, #tpu.memory_space<vmem>>, vector<16x32xf32>
    %cst_14 = arith.constant dense<0.000000e+00> : vector<16x32xf32>
    %64 = tpu.matmul %62, %63, %cst_14 {dimension_numbers = #tpu.dot_dimension_numbers<[1], [0], [0], [1], [0, 0, 1, 1], [], []>} : vector<16x16xf32>, vector<16x32xf32>, vector<16x32xf32> -> vector<16x32xf32>
    %65 = arith.addf %53, %64 : vector<16x32xf32>
    %c0_15 = arith.constant 0 : index
    %c0_16 = arith.constant 0 : index
    %66 = vector.load %arg1[%c0_15, %c0_16] : memref<16x1xi32, #tpu.memory_space<vmem>>, vector<16x1xi32>
    %67 = tpu.iota {dimensions = array<i32: 1>} : vector<1x2xi32>
    %68 = vector.broadcast %66 : vector<16x1xi32> to vector<16x2xi32>
    %69 = vector.broadcast %67 : vector<1x2xi32> to vector<16x2xi32>
    %70 = arith.cmpi eq, %68, %69 : vector<16x2xi32>
    %71 = arith.extui %70 : vector<16x2xi1> to vector<16x2xi32>
    %72 = arith.sitofp %71 : vector<16x2xi32> to vector<16x2xf32>
    %c0_17 = arith.constant 0 : index
    %c0_18 = arith.constant 0 : index
    %73 = vector.load %arg5[%c0_17, %c0_18] : memref<2x32xf32, #tpu.memory_space<vmem>>, vector<2x32xf32>
    %cst_19 = arith.constant dense<0.000000e+00> : vector<16x32xf32>
    %74 = tpu.matmul %72, %73, %cst_19 {dimension_numbers = #tpu.dot_dimension_numbers<[1], [0], [0], [1], [0, 0, 1, 1], [], []>} : vector<16x2xf32>, vector<2x32xf32>, vector<16x32xf32> -> vector<16x32xf32>
    %75 = arith.addf %65, %74 : vector<16x32xf32>
    %c0_20 = arith.constant 0 : index
    %c0_21 = arith.constant 0 : index
    %76 = vector.load %arg6[%c0_20, %c0_21] : memref<1x32xf32, #tpu.memory_space<vmem>>, vector<1x32xf32>
    %c0_22 = arith.constant 0 : index
    %c0_23 = arith.constant 0 : index
    %77 = vector.load %arg7[%c0_22, %c0_23] : memref<1x32xf32, #tpu.memory_space<vmem>>, vector<1x32xf32>
    %cst_24 = arith.constant dense<0.000000e+00> : vector<16xf32>
    %78 = vector.multi_reduction <add>, %75, %cst_24 [1] : vector<16x32xf32> to vector<16xf32>
    %79 = vector.shape_cast %78 : vector<16xf32> to vector<16x1xf32>
    %cst_25 = arith.constant 3.200000e+01 : f32
    %80 = vector.broadcast %cst_25 : f32 to vector<16x1xf32>
    %81 = arith.divf %79, %80 : vector<16x1xf32>
    %82 = vector.broadcast %81 : vector<16x1xf32> to vector<16x32xf32>
    %83 = arith.subf %75, %82 : vector<16x32xf32>
    %84 = arith.mulf %83, %83 : vector<16x32xf32>
    %cst_26 = arith.constant dense<0.000000e+00> : vector<16xf32>
    %85 = vector.multi_reduction <add>, %84, %cst_26 [1] : vector<16x32xf32> to vector<16xf32>
    %86 = vector.shape_cast %85 : vector<16xf32> to vector<16x1xf32>
    %cst_27 = arith.constant 3.200000e+01 : f32
    %87 = vector.broadcast %cst_27 : f32 to vector<16x1xf32>
    %88 = arith.divf %86, %87 : vector<16x1xf32>
    %89 = vector.broadcast %81 : vector<16x1xf32> to vector<16x32xf32>
    %90 = arith.subf %75, %89 : vector<16x32xf32>
    %cst_28 = arith.constant 9.99999996E-13 : f32
    %91 = vector.broadcast %cst_28 : f32 to vector<16x1xf32>
    %92 = arith.addf %88, %91 : vector<16x1xf32>
    %93 = math.rsqrt %92 : vector<16x1xf32>
    %94 = vector.broadcast %93 : vector<16x1xf32> to vector<16x32xf32>
    %95 = arith.mulf %90, %94 : vector<16x32xf32>
    %96 = vector.broadcast %76 : vector<1x32xf32> to vector<16x32xf32>
    %97 = arith.mulf %95, %96 : vector<16x32xf32>
    %98 = vector.broadcast %77 : vector<1x32xf32> to vector<16x32xf32>
    %99 = arith.addf %97, %98 : vector<16x32xf32>
    %c0_29 = arith.constant 0 : index
    %c0_30 = arith.constant 0 : index
    %c0_31 = arith.constant 0 : index
    %100 = vector.load %arg8[%c0_29, %c0_30, %c0_31] : memref<2x32x96xf32, #tpu.memory_space<vmem>>, vector<1x32x96xf32>
    %101 = vector.shape_cast %100 : vector<1x32x96xf32> to vector<32x96xf32>
    %cst_32 = arith.constant dense<0.000000e+00> : vector<16x96xf32>
    %102 = tpu.matmul %99, %101, %cst_32 {dimension_numbers = #tpu.dot_dimension_numbers<[1], [0], [0], [1], [0, 0, 1, 1], [], []>} : vector<16x32xf32>, vector<32x96xf32>, vector<16x96xf32> -> vector<16x96xf32>
    %c0_33 = arith.constant 0 : index
    %c0_34 = arith.constant 0 : index
    %c0_35 = arith.constant 0 : index
    %103 = vector.load %arg9[%c0_33, %c0_34, %c0_35] : memref<2x1x96xf32, #tpu.memory_space<vmem>>, vector<1x1x96xf32>
    %104 = vector.shape_cast %103 : vector<1x1x96xf32> to vector<1x96xf32>
    %105 = vector.broadcast %104 : vector<1x96xf32> to vector<16x96xf32>
    %106 = arith.addf %102, %105 : vector<16x96xf32>
    %107 = vector.extract_strided_slice %106 {offsets = [0, 0], sizes = [16, 32], strides = [1, 1]} : vector<16x96xf32> to vector<16x32xf32>
    %108 = vector.extract_strided_slice %106 {offsets = [0, 32], sizes = [16, 32], strides = [1, 1]} : vector<16x96xf32> to vector<16x32xf32>
    %109 = vector.extract_strided_slice %106 {offsets = [0, 64], sizes = [16, 32], strides = [1, 1]} : vector<16x96xf32> to vector<16x32xf32>
    %110 = tpu.concatenate %107, %107, %107, %107 in 0 : vector<16x32xf32>, vector<16x32xf32>, vector<16x32xf32>, vector<16x32xf32> -> vector<64x32xf32>
    %111 = arith.mulf %110, %8 : vector<64x32xf32>
    "tpu.trace_start"() <{level = 10 : i32, message = "rd,kd->rk"}> : () -> ()
    %cst_36 = arith.constant dense<0.000000e+00> : vector<64x16xf32>
    %112 = tpu.matmul %111, %108, %cst_36 {dimension_numbers = #tpu.dot_dimension_numbers<[1], [1], [0], [0], [0, 0, 1, 0], [], []>} : vector<64x32xf32>, vector<16x32xf32>, vector<64x16xf32> -> vector<64x16xf32>
    "tpu.trace_stop"() : () -> ()
    %113 = arith.addf %112, %44 : vector<64x16xf32>
    %cst_37 = arith.constant dense<0xFF800000> : vector<64xf32>
    %114 = vector.multi_reduction <maximumf>, %113, %cst_37 [1] : vector<64x16xf32> to vector<64xf32>
    %115 = vector.shape_cast %114 : vector<64xf32> to vector<64x1xf32>
    %116 = vector.broadcast %115 : vector<64x1xf32> to vector<64x16xf32>
    %117 = arith.subf %113, %116 : vector<64x16xf32>
    %118 = math.exp %117 : vector<64x16xf32>
    %cst_38 = arith.constant dense<0.000000e+00> : vector<64xf32>
    %119 = vector.multi_reduction <add>, %118, %cst_38 [1] : vector<64x16xf32> to vector<64xf32>
    %120 = vector.shape_cast %119 : vector<64xf32> to vector<64x1xf32>
    %121 = vector.broadcast %120 : vector<64x1xf32> to vector<64x16xf32>
    %122 = arith.divf %118, %121 : vector<64x16xf32>
    %cst_39 = arith.constant dense<0.000000e+00> : vector<64x32xf32>
    %123 = tpu.matmul %122, %109, %cst_39 {dimension_numbers = #tpu.dot_dimension_numbers<[1], [0], [0], [1], [0, 0, 1, 1], [], []>} : vector<64x16xf32>, vector<16x32xf32>, vector<64x32xf32> -> vector<64x32xf32>
    %124 = vector.extract_strided_slice %123 {offsets = [0, 0], sizes = [16, 32], strides = [1, 1]} : vector<64x32xf32> to vector<16x32xf32>
    %125 = vector.broadcast %15 : vector<1x32xf32> to vector<16x32xf32>
    %126 = arith.mulf %125, %124 : vector<16x32xf32>
    %127 = vector.extract_strided_slice %123 {offsets = [16, 0], sizes = [16, 32], strides = [1, 1]} : vector<64x32xf32> to vector<16x32xf32>
    %128 = vector.broadcast %19 : vector<1x32xf32> to vector<16x32xf32>
    %129 = arith.mulf %128, %127 : vector<16x32xf32>
    %130 = arith.addf %126, %129 : vector<16x32xf32>
    %131 = vector.extract_strided_slice %123 {offsets = [32, 0], sizes = [16, 32], strides = [1, 1]} : vector<64x32xf32> to vector<16x32xf32>
    %132 = vector.broadcast %23 : vector<1x32xf32> to vector<16x32xf32>
    %133 = arith.mulf %132, %131 : vector<16x32xf32>
    %134 = arith.addf %130, %133 : vector<16x32xf32>
    %135 = vector.extract_strided_slice %123 {offsets = [48, 0], sizes = [16, 32], strides = [1, 1]} : vector<64x32xf32> to vector<16x32xf32>
    %136 = vector.broadcast %27 : vector<1x32xf32> to vector<16x32xf32>
    %137 = arith.mulf %136, %135 : vector<16x32xf32>
    %138 = arith.addf %134, %137 : vector<16x32xf32>
    %c0_40 = arith.constant 0 : index
    %c0_41 = arith.constant 0 : index
    %c0_42 = arith.constant 0 : index
    %139 = vector.load %arg10[%c0_40, %c0_41, %c0_42] : memref<2x32x32xf32, #tpu.memory_space<vmem>>, vector<1x32x32xf32>
    %140 = vector.shape_cast %139 : vector<1x32x32xf32> to vector<32x32xf32>
    %cst_43 = arith.constant dense<0.000000e+00> : vector<16x32xf32>
    %141 = tpu.matmul %138, %140, %cst_43 {dimension_numbers = #tpu.dot_dimension_numbers<[1], [0], [0], [1], [0, 0, 1, 1], [], []>} : vector<16x32xf32>, vector<32x32xf32>, vector<16x32xf32> -> vector<16x32xf32>
    %c0_44 = arith.constant 0 : index
    %c0_45 = arith.constant 0 : index
    %c0_46 = arith.constant 0 : index
    %142 = vector.load %arg11[%c0_44, %c0_45, %c0_46] : memref<2x1x32xf32, #tpu.memory_space<vmem>>, vector<1x1x32xf32>
    %143 = vector.shape_cast %142 : vector<1x1x32xf32> to vector<1x32xf32>
    %144 = vector.broadcast %143 : vector<1x32xf32> to vector<16x32xf32>
    %145 = arith.addf %141, %144 : vector<16x32xf32>
    %146 = arith.addf %99, %145 : vector<16x32xf32>
    %c0_47 = arith.constant 0 : index
    %c0_48 = arith.constant 0 : index
    %c0_49 = arith.constant 0 : index
    %147 = vector.load %arg12[%c0_47, %c0_48, %c0_49] : memref<2x1x32xf32, #tpu.memory_space<vmem>>, vector<1x1x32xf32>
    %148 = vector.shape_cast %147 : vector<1x1x32xf32> to vector<1x32xf32>
    %c0_50 = arith.constant 0 : index
    %c0_51 = arith.constant 0 : index
    %c0_52 = arith.constant 0 : index
    %149 = vector.load %arg13[%c0_50, %c0_51, %c0_52] : memref<2x1x32xf32, #tpu.memory_space<vmem>>, vector<1x1x32xf32>
    %150 = vector.shape_cast %149 : vector<1x1x32xf32> to vector<1x32xf32>
    %cst_53 = arith.constant dense<0.000000e+00> : vector<16xf32>
    %151 = vector.multi_reduction <add>, %146, %cst_53 [1] : vector<16x32xf32> to vector<16xf32>
    %152 = vector.shape_cast %151 : vector<16xf32> to vector<16x1xf32>
    %cst_54 = arith.constant 3.200000e+01 : f32
    %153 = vector.broadcast %cst_54 : f32 to vector<16x1xf32>
    %154 = arith.divf %152, %153 : vector<16x1xf32>
    %155 = vector.broadcast %154 : vector<16x1xf32> to vector<16x32xf32>
    %156 = arith.subf %146, %155 : vector<16x32xf32>
    %157 = arith.mulf %156, %156 : vector<16x32xf32>
    %cst_55 = arith.constant dense<0.000000e+00> : vector<16xf32>
    %158 = vector.multi_reduction <add>, %157, %cst_55 [1] : vector<16x32xf32> to vector<16xf32>
    %159 = vector.shape_cast %158 : vector<16xf32> to vector<16x1xf32>
    %cst_56 = arith.constant 3.200000e+01 : f32
    %160 = vector.broadcast %cst_56 : f32 to vector<16x1xf32>
    %161 = arith.divf %159, %160 : vector<16x1xf32>
    %162 = vector.broadcast %154 : vector<16x1xf32> to vector<16x32xf32>
    %163 = arith.subf %146, %162 : vector<16x32xf32>
    %cst_57 = arith.constant 9.99999974E-6 : f32
    %164 = vector.broadcast %cst_57 : f32 to vector<16x1xf32>
    %165 = arith.addf %161, %164 : vector<16x1xf32>
    %166 = math.rsqrt %165 : vector<16x1xf32>
    %167 = vector.broadcast %166 : vector<16x1xf32> to vector<16x32xf32>
    %168 = arith.mulf %163, %167 : vector<16x32xf32>
    %169 = vector.broadcast %148 : vector<1x32xf32> to vector<16x32xf32>
    %170 = arith.mulf %168, %169 : vector<16x32xf32>
    %171 = vector.broadcast %150 : vector<1x32xf32> to vector<16x32xf32>
    %172 = arith.addf %170, %171 : vector<16x32xf32>
    %c0_58 = arith.constant 0 : index
    %c0_59 = arith.constant 0 : index
    %c0_60 = arith.constant 0 : index
    %173 = vector.load %arg14[%c0_58, %c0_59, %c0_60] : memref<2x32x64xf32, #tpu.memory_space<vmem>>, vector<1x32x64xf32>
    %174 = vector.shape_cast %173 : vector<1x32x64xf32> to vector<32x64xf32>
    %cst_61 = arith.constant dense<0.000000e+00> : vector<16x64xf32>
    %175 = tpu.matmul %172, %174, %cst_61 {dimension_numbers = #tpu.dot_dimension_numbers<[1], [0], [0], [1], [0, 0, 1, 1], [], []>} : vector<16x32xf32>, vector<32x64xf32>, vector<16x64xf32> -> vector<16x64xf32>
    %c0_62 = arith.constant 0 : index
    %c0_63 = arith.constant 0 : index
    %c0_64 = arith.constant 0 : index
    %176 = vector.load %arg15[%c0_62, %c0_63, %c0_64] : memref<2x1x64xf32, #tpu.memory_space<vmem>>, vector<1x1x64xf32>
    %177 = vector.shape_cast %176 : vector<1x1x64xf32> to vector<1x64xf32>
    %178 = vector.broadcast %177 : vector<1x64xf32> to vector<16x64xf32>
    %179 = arith.addf %175, %178 : vector<16x64xf32>
    %cst_65 = arith.constant 5.000000e-01 : f32
    %180 = vector.broadcast %cst_65 : f32 to vector<16x64xf32>
    %181 = arith.mulf %180, %179 : vector<16x64xf32>
    %cst_66 = arith.constant 4.471500e-02 : f32
    %182 = vector.broadcast %cst_66 : f32 to vector<16x64xf32>
    %183 = arith.mulf %182, %179 : vector<16x64xf32>
    %184 = arith.mulf %183, %179 : vector<16x64xf32>
    %185 = arith.mulf %184, %179 : vector<16x64xf32>
    %186 = arith.addf %179, %185 : vector<16x64xf32>
    %cst_67 = arith.constant 0.797884583 : f32
    %187 = vector.broadcast %cst_67 : f32 to vector<16x64xf32>
    %188 = arith.mulf %187, %186 : vector<16x64xf32>
    %189 = math.tanh %188 : vector<16x64xf32>
    %cst_68 = arith.constant 1.000000e+00 : f32
    %190 = vector.broadcast %cst_68 : f32 to vector<16x64xf32>
    %191 = arith.addf %190, %189 : vector<16x64xf32>
    %192 = arith.mulf %181, %191 : vector<16x64xf32>
    %c0_69 = arith.constant 0 : index
    %c0_70 = arith.constant 0 : index
    %c0_71 = arith.constant 0 : index
    %193 = vector.load %arg16[%c0_69, %c0_70, %c0_71] : memref<2x64x32xf32, #tpu.memory_space<vmem>>, vector<1x64x32xf32>
    %194 = vector.shape_cast %193 : vector<1x64x32xf32> to vector<64x32xf32>
    %cst_72 = arith.constant dense<0.000000e+00> : vector<16x32xf32>
    %195 = tpu.matmul %192, %194, %cst_72 {dimension_numbers = #tpu.dot_dimension_numbers<[1], [0], [0], [1], [0, 0, 1, 1], [], []>} : vector<16x64xf32>, vector<64x32xf32>, vector<16x32xf32> -> vector<16x32xf32>
    %c0_73 = arith.constant 0 : index
    %c0_74 = arith.constant 0 : index
    %c0_75 = arith.constant 0 : index
    %196 = vector.load %arg17[%c0_73, %c0_74, %c0_75] : memref<2x1x32xf32, #tpu.memory_space<vmem>>, vector<1x1x32xf32>
    %197 = vector.shape_cast %196 : vector<1x1x32xf32> to vector<1x32xf32>
    %198 = vector.broadcast %197 : vector<1x32xf32> to vector<16x32xf32>
    %199 = arith.addf %195, %198 : vector<16x32xf32>
    %200 = arith.addf %172, %199 : vector<16x32xf32>
    %c0_76 = arith.constant 0 : index
    %c0_77 = arith.constant 0 : index
    %c0_78 = arith.constant 0 : index
    %201 = vector.load %arg18[%c0_76, %c0_77, %c0_78] : memref<2x1x32xf32, #tpu.memory_space<vmem>>, vector<1x1x32xf32>
    %202 = vector.shape_cast %201 : vector<1x1x32xf32> to vector<1x32xf32>
    %c0_79 = arith.constant 0 : index
    %c0_80 = arith.constant 0 : index
    %c0_81 = arith.constant 0 : index
    %203 = vector.load %arg19[%c0_79, %c0_80, %c0_81] : memref<2x1x32xf32, #tpu.memory_space<vmem>>, vector<1x1x32xf32>
    %204 = vector.shape_cast %203 : vector<1x1x32xf32> to vector<1x32xf32>
    %cst_82 = arith.constant dense<0.000000e+00> : vector<16xf32>
    %205 = vector.multi_reduction <add>, %200, %cst_82 [1] : vector<16x32xf32> to vector<16xf32>
    %206 = vector.shape_cast %205 : vector<16xf32> to vector<16x1xf32>
    %cst_83 = arith.constant 3.200000e+01 : f32
    %207 = vector.broadcast %cst_83 : f32 to vector<16x1xf32>
    %208 = arith.divf %206, %207 : vector<16x1xf32>
    %209 = vector.broadcast %208 : vector<16x1xf32> to vector<16x32xf32>
    %210 = arith.subf %200, %209 : vector<16x32xf32>
    %211 = arith.mulf %210, %210 : vector<16x32xf32>
    %cst_84 = arith.constant dense<0.000000e+00> : vector<16xf32>
    %212 = vector.multi_reduction <add>, %211, %cst_84 [1] : vector<16x32xf32> to vector<16xf32>
    %213 = vector.shape_cast %212 : vector<16xf32> to vector<16x1xf32>
    %cst_85 = arith.constant 3.200000e+01 : f32
    %214 = vector.broadcast %cst_85 : f32 to vector<16x1xf32>
    %215 = arith.divf %213, %214 : vector<16x1xf32>
    %216 = vector.broadcast %208 : vector<16x1xf32> to vector<16x32xf32>
    %217 = arith.subf %200, %216 : vector<16x32xf32>
    %cst_86 = arith.constant 9.99999974E-6 : f32
    %218 = vector.broadcast %cst_86 : f32 to vector<16x1xf32>
    %219 = arith.addf %215, %218 : vector<16x1xf32>
    %220 = math.rsqrt %219 : vector<16x1xf32>
    %221 = vector.broadcast %220 : vector<16x1xf32> to vector<16x32xf32>
    %222 = arith.mulf %217, %221 : vector<16x32xf32>
    %223 = vector.broadcast %202 : vector<1x32xf32> to vector<16x32xf32>
    %224 = arith.mulf %222, %223 : vector<16x32xf32>
    %225 = vector.broadcast %204 : vector<1x32xf32> to vector<16x32xf32>
    %226 = arith.addf %224, %225 : vector<16x32xf32>
    %c1 = arith.constant 1 : index
    %c0_87 = arith.constant 0 : index
    %c0_88 = arith.constant 0 : index
    %227 = vector.load %arg8[%c1, %c0_87, %c0_88] : memref<2x32x96xf32, #tpu.memory_space<vmem>>, vector<1x32x96xf32>
    %228 = vector.shape_cast %227 : vector<1x32x96xf32> to vector<32x96xf32>
    %cst_89 = arith.constant dense<0.000000e+00> : vector<16x96xf32>
    %229 = tpu.matmul %226, %228, %cst_89 {dimension_numbers = #tpu.dot_dimension_numbers<[1], [0], [0], [1], [0, 0, 1, 1], [], []>} : vector<16x32xf32>, vector<32x96xf32>, vector<16x96xf32> -> vector<16x96xf32>
    %c1_90 = arith.constant 1 : index
    %c0_91 = arith.constant 0 : index
    %c0_92 = arith.constant 0 : index
    %230 = vector.load %arg9[%c1_90, %c0_91, %c0_92] : memref<2x1x96xf32, #tpu.memory_space<vmem>>, vector<1x1x96xf32>
    %231 = vector.shape_cast %230 : vector<1x1x96xf32> to vector<1x96xf32>
    %232 = vector.broadcast %231 : vector<1x96xf32> to vector<16x96xf32>
    %233 = arith.addf %229, %232 : vector<16x96xf32>
    %234 = vector.extract_strided_slice %233 {offsets = [0, 0], sizes = [16, 32], strides = [1, 1]} : vector<16x96xf32> to vector<16x32xf32>
    %235 = vector.extract_strided_slice %233 {offsets = [0, 32], sizes = [16, 32], strides = [1, 1]} : vector<16x96xf32> to vector<16x32xf32>
    %236 = vector.extract_strided_slice %233 {offsets = [0, 64], sizes = [16, 32], strides = [1, 1]} : vector<16x96xf32> to vector<16x32xf32>
    %237 = tpu.concatenate %234, %234, %234, %234 in 0 : vector<16x32xf32>, vector<16x32xf32>, vector<16x32xf32>, vector<16x32xf32> -> vector<64x32xf32>
    %238 = arith.mulf %237, %8 : vector<64x32xf32>
    "tpu.trace_start"() <{level = 10 : i32, message = "rd,kd->rk"}> : () -> ()
    %cst_93 = arith.constant dense<0.000000e+00> : vector<64x16xf32>
    %239 = tpu.matmul %238, %235, %cst_93 {dimension_numbers = #tpu.dot_dimension_numbers<[1], [1], [0], [0], [0, 0, 1, 0], [], []>} : vector<64x32xf32>, vector<16x32xf32>, vector<64x16xf32> -> vector<64x16xf32>
    "tpu.trace_stop"() : () -> ()
    %240 = arith.addf %239, %44 : vector<64x16xf32>
    %cst_94 = arith.constant dense<0xFF800000> : vector<64xf32>
    %241 = vector.multi_reduction <maximumf>, %240, %cst_94 [1] : vector<64x16xf32> to vector<64xf32>
    %242 = vector.shape_cast %241 : vector<64xf32> to vector<64x1xf32>
    %243 = vector.broadcast %242 : vector<64x1xf32> to vector<64x16xf32>
    %244 = arith.subf %240, %243 : vector<64x16xf32>
    %245 = math.exp %244 : vector<64x16xf32>
    %cst_95 = arith.constant dense<0.000000e+00> : vector<64xf32>
    %246 = vector.multi_reduction <add>, %245, %cst_95 [1] : vector<64x16xf32> to vector<64xf32>
    %247 = vector.shape_cast %246 : vector<64xf32> to vector<64x1xf32>
    %248 = vector.broadcast %247 : vector<64x1xf32> to vector<64x16xf32>
    %249 = arith.divf %245, %248 : vector<64x16xf32>
    %cst_96 = arith.constant dense<0.000000e+00> : vector<64x32xf32>
    %250 = tpu.matmul %249, %236, %cst_96 {dimension_numbers = #tpu.dot_dimension_numbers<[1], [0], [0], [1], [0, 0, 1, 1], [], []>} : vector<64x16xf32>, vector<16x32xf32>, vector<64x32xf32> -> vector<64x32xf32>
    %251 = vector.extract_strided_slice %250 {offsets = [0, 0], sizes = [16, 32], strides = [1, 1]} : vector<64x32xf32> to vector<16x32xf32>
    %252 = vector.broadcast %15 : vector<1x32xf32> to vector<16x32xf32>
    %253 = arith.mulf %252, %251 : vector<16x32xf32>
    %254 = vector.extract_strided_slice %250 {offsets = [16, 0], sizes = [16, 32], strides = [1, 1]} : vector<64x32xf32> to vector<16x32xf32>
    %255 = vector.broadcast %19 : vector<1x32xf32> to vector<16x32xf32>
    %256 = arith.mulf %255, %254 : vector<16x32xf32>
    %257 = arith.addf %253, %256 : vector<16x32xf32>
    %258 = vector.extract_strided_slice %250 {offsets = [32, 0], sizes = [16, 32], strides = [1, 1]} : vector<64x32xf32> to vector<16x32xf32>
    %259 = vector.broadcast %23 : vector<1x32xf32> to vector<16x32xf32>
    %260 = arith.mulf %259, %258 : vector<16x32xf32>
    %261 = arith.addf %257, %260 : vector<16x32xf32>
    %262 = vector.extract_strided_slice %250 {offsets = [48, 0], sizes = [16, 32], strides = [1, 1]} : vector<64x32xf32> to vector<16x32xf32>
    %263 = vector.broadcast %27 : vector<1x32xf32> to vector<16x32xf32>
    %264 = arith.mulf %263, %262 : vector<16x32xf32>
    %265 = arith.addf %261, %264 : vector<16x32xf32>
    %c1_97 = arith.constant 1 : index
    %c0_98 = arith.constant 0 : index
    %c0_99 = arith.constant 0 : index
    %266 = vector.load %arg10[%c1_97, %c0_98, %c0_99] : memref<2x32x32xf32, #tpu.memory_space<vmem>>, vector<1x32x32xf32>
    %267 = vector.shape_cast %266 : vector<1x32x32xf32> to vector<32x32xf32>
    %cst_100 = arith.constant dense<0.000000e+00> : vector<16x32xf32>
    %268 = tpu.matmul %265, %267, %cst_100 {dimension_numbers = #tpu.dot_dimension_numbers<[1], [0], [0], [1], [0, 0, 1, 1], [], []>} : vector<16x32xf32>, vector<32x32xf32>, vector<16x32xf32> -> vector<16x32xf32>
    %c1_101 = arith.constant 1 : index
    %c0_102 = arith.constant 0 : index
    %c0_103 = arith.constant 0 : index
    %269 = vector.load %arg11[%c1_101, %c0_102, %c0_103] : memref<2x1x32xf32, #tpu.memory_space<vmem>>, vector<1x1x32xf32>
    %270 = vector.shape_cast %269 : vector<1x1x32xf32> to vector<1x32xf32>
    %271 = vector.broadcast %270 : vector<1x32xf32> to vector<16x32xf32>
    %272 = arith.addf %268, %271 : vector<16x32xf32>
    %273 = arith.addf %226, %272 : vector<16x32xf32>
    %c1_104 = arith.constant 1 : index
    %c0_105 = arith.constant 0 : index
    %c0_106 = arith.constant 0 : index
    %274 = vector.load %arg12[%c1_104, %c0_105, %c0_106] : memref<2x1x32xf32, #tpu.memory_space<vmem>>, vector<1x1x32xf32>
    %275 = vector.shape_cast %274 : vector<1x1x32xf32> to vector<1x32xf32>
    %c1_107 = arith.constant 1 : index
    %c0_108 = arith.constant 0 : index
    %c0_109 = arith.constant 0 : index
    %276 = vector.load %arg13[%c1_107, %c0_108, %c0_109] : memref<2x1x32xf32, #tpu.memory_space<vmem>>, vector<1x1x32xf32>
    %277 = vector.shape_cast %276 : vector<1x1x32xf32> to vector<1x32xf32>
    %cst_110 = arith.constant dense<0.000000e+00> : vector<16xf32>
    %278 = vector.multi_reduction <add>, %273, %cst_110 [1] : vector<16x32xf32> to vector<16xf32>
    %279 = vector.shape_cast %278 : vector<16xf32> to vector<16x1xf32>
    %cst_111 = arith.constant 3.200000e+01 : f32
    %280 = vector.broadcast %cst_111 : f32 to vector<16x1xf32>
    %281 = arith.divf %279, %280 : vector<16x1xf32>
    %282 = vector.broadcast %281 : vector<16x1xf32> to vector<16x32xf32>
    %283 = arith.subf %273, %282 : vector<16x32xf32>
    %284 = arith.mulf %283, %283 : vector<16x32xf32>
    %cst_112 = arith.constant dense<0.000000e+00> : vector<16xf32>
    %285 = vector.multi_reduction <add>, %284, %cst_112 [1] : vector<16x32xf32> to vector<16xf32>
    %286 = vector.shape_cast %285 : vector<16xf32> to vector<16x1xf32>
    %cst_113 = arith.constant 3.200000e+01 : f32
    %287 = vector.broadcast %cst_113 : f32 to vector<16x1xf32>
    %288 = arith.divf %286, %287 : vector<16x1xf32>
    %289 = vector.broadcast %281 : vector<16x1xf32> to vector<16x32xf32>
    %290 = arith.subf %273, %289 : vector<16x32xf32>
    %cst_114 = arith.constant 9.99999974E-6 : f32
    %291 = vector.broadcast %cst_114 : f32 to vector<16x1xf32>
    %292 = arith.addf %288, %291 : vector<16x1xf32>
    %293 = math.rsqrt %292 : vector<16x1xf32>
    %294 = vector.broadcast %293 : vector<16x1xf32> to vector<16x32xf32>
    %295 = arith.mulf %290, %294 : vector<16x32xf32>
    %296 = vector.broadcast %275 : vector<1x32xf32> to vector<16x32xf32>
    %297 = arith.mulf %295, %296 : vector<16x32xf32>
    %298 = vector.broadcast %277 : vector<1x32xf32> to vector<16x32xf32>
    %299 = arith.addf %297, %298 : vector<16x32xf32>
    %c1_115 = arith.constant 1 : index
    %c0_116 = arith.constant 0 : index
    %c0_117 = arith.constant 0 : index
    %300 = vector.load %arg14[%c1_115, %c0_116, %c0_117] : memref<2x32x64xf32, #tpu.memory_space<vmem>>, vector<1x32x64xf32>
    %301 = vector.shape_cast %300 : vector<1x32x64xf32> to vector<32x64xf32>
    %cst_118 = arith.constant dense<0.000000e+00> : vector<16x64xf32>
    %302 = tpu.matmul %299, %301, %cst_118 {dimension_numbers = #tpu.dot_dimension_numbers<[1], [0], [0], [1], [0, 0, 1, 1], [], []>} : vector<16x32xf32>, vector<32x64xf32>, vector<16x64xf32> -> vector<16x64xf32>
    %c1_119 = arith.constant 1 : index
    %c0_120 = arith.constant 0 : index
    %c0_121 = arith.constant 0 : index
    %303 = vector.load %arg15[%c1_119, %c0_120, %c0_121] : memref<2x1x64xf32, #tpu.memory_space<vmem>>, vector<1x1x64xf32>
    %304 = vector.shape_cast %303 : vector<1x1x64xf32> to vector<1x64xf32>
    %305 = vector.broadcast %304 : vector<1x64xf32> to vector<16x64xf32>
    %306 = arith.addf %302, %305 : vector<16x64xf32>
    %cst_122 = arith.constant 5.000000e-01 : f32
    %307 = vector.broadcast %cst_122 : f32 to vector<16x64xf32>
    %308 = arith.mulf %307, %306 : vector<16x64xf32>
    %cst_123 = arith.constant 4.471500e-02 : f32
    %309 = vector.broadcast %cst_123 : f32 to vector<16x64xf32>
    %310 = arith.mulf %309, %306 : vector<16x64xf32>
    %311 = arith.mulf %310, %306 : vector<16x64xf32>
    %312 = arith.mulf %311, %306 : vector<16x64xf32>
    %313 = arith.addf %306, %312 : vector<16x64xf32>
    %cst_124 = arith.constant 0.797884583 : f32
    %314 = vector.broadcast %cst_124 : f32 to vector<16x64xf32>
    %315 = arith.mulf %314, %313 : vector<16x64xf32>
    %316 = math.tanh %315 : vector<16x64xf32>
    %cst_125 = arith.constant 1.000000e+00 : f32
    %317 = vector.broadcast %cst_125 : f32 to vector<16x64xf32>
    %318 = arith.addf %317, %316 : vector<16x64xf32>
    %319 = arith.mulf %308, %318 : vector<16x64xf32>
    %c1_126 = arith.constant 1 : index
    %c0_127 = arith.constant 0 : index
    %c0_128 = arith.constant 0 : index
    %320 = vector.load %arg16[%c1_126, %c0_127, %c0_128] : memref<2x64x32xf32, #tpu.memory_space<vmem>>, vector<1x64x32xf32>
    %321 = vector.shape_cast %320 : vector<1x64x32xf32> to vector<64x32xf32>
    %cst_129 = arith.constant dense<0.000000e+00> : vector<16x32xf32>
    %322 = tpu.matmul %319, %321, %cst_129 {dimension_numbers = #tpu.dot_dimension_numbers<[1], [0], [0], [1], [0, 0, 1, 1], [], []>} : vector<16x64xf32>, vector<64x32xf32>, vector<16x32xf32> -> vector<16x32xf32>
    %c1_130 = arith.constant 1 : index
    %c0_131 = arith.constant 0 : index
    %c0_132 = arith.constant 0 : index
    %323 = vector.load %arg17[%c1_130, %c0_131, %c0_132] : memref<2x1x32xf32, #tpu.memory_space<vmem>>, vector<1x1x32xf32>
    %324 = vector.shape_cast %323 : vector<1x1x32xf32> to vector<1x32xf32>
    %325 = vector.broadcast %324 : vector<1x32xf32> to vector<16x32xf32>
    %326 = arith.addf %322, %325 : vector<16x32xf32>
    %327 = arith.addf %299, %326 : vector<16x32xf32>
    %c1_133 = arith.constant 1 : index
    %c0_134 = arith.constant 0 : index
    %c0_135 = arith.constant 0 : index
    %328 = vector.load %arg18[%c1_133, %c0_134, %c0_135] : memref<2x1x32xf32, #tpu.memory_space<vmem>>, vector<1x1x32xf32>
    %329 = vector.shape_cast %328 : vector<1x1x32xf32> to vector<1x32xf32>
    %c1_136 = arith.constant 1 : index
    %c0_137 = arith.constant 0 : index
    %c0_138 = arith.constant 0 : index
    %330 = vector.load %arg19[%c1_136, %c0_137, %c0_138] : memref<2x1x32xf32, #tpu.memory_space<vmem>>, vector<1x1x32xf32>
    %331 = vector.shape_cast %330 : vector<1x1x32xf32> to vector<1x32xf32>
    %cst_139 = arith.constant dense<0.000000e+00> : vector<16xf32>
    %332 = vector.multi_reduction <add>, %327, %cst_139 [1] : vector<16x32xf32> to vector<16xf32>
    %333 = vector.shape_cast %332 : vector<16xf32> to vector<16x1xf32>
    %cst_140 = arith.constant 3.200000e+01 : f32
    %334 = vector.broadcast %cst_140 : f32 to vector<16x1xf32>
    %335 = arith.divf %333, %334 : vector<16x1xf32>
    %336 = vector.broadcast %335 : vector<16x1xf32> to vector<16x32xf32>
    %337 = arith.subf %327, %336 : vector<16x32xf32>
    %338 = arith.mulf %337, %337 : vector<16x32xf32>
    %cst_141 = arith.constant dense<0.000000e+00> : vector<16xf32>
    %339 = vector.multi_reduction <add>, %338, %cst_141 [1] : vector<16x32xf32> to vector<16xf32>
    %340 = vector.shape_cast %339 : vector<16xf32> to vector<16x1xf32>
    %cst_142 = arith.constant 3.200000e+01 : f32
    %341 = vector.broadcast %cst_142 : f32 to vector<16x1xf32>
    %342 = arith.divf %340, %341 : vector<16x1xf32>
    %343 = vector.broadcast %335 : vector<16x1xf32> to vector<16x32xf32>
    %344 = arith.subf %327, %343 : vector<16x32xf32>
    %cst_143 = arith.constant 9.99999974E-6 : f32
    %345 = vector.broadcast %cst_143 : f32 to vector<16x1xf32>
    %346 = arith.addf %342, %345 : vector<16x1xf32>
    %347 = math.rsqrt %346 : vector<16x1xf32>
    %348 = vector.broadcast %347 : vector<16x1xf32> to vector<16x32xf32>
    %349 = arith.mulf %344, %348 : vector<16x32xf32>
    %350 = vector.broadcast %329 : vector<1x32xf32> to vector<16x32xf32>
    %351 = arith.mulf %349, %350 : vector<16x32xf32>
    %352 = vector.broadcast %331 : vector<1x32xf32> to vector<16x32xf32>
    %353 = arith.addf %351, %352 : vector<16x32xf32>
    %c0_144 = arith.constant 0 : index
    %c0_145 = arith.constant 0 : index
    %354 = vector.load %arg20[%c0_144, %c0_145] : memref<32x32xf32, #tpu.memory_space<vmem>>, vector<32x32xf32>
    %cst_146 = arith.constant dense<0.000000e+00> : vector<16x32xf32>
    %355 = tpu.matmul %353, %354, %cst_146 {dimension_numbers = #tpu.dot_dimension_numbers<[1], [0], [0], [1], [0, 0, 1, 1], [], []>} : vector<16x32xf32>, vector<32x32xf32>, vector<16x32xf32> -> vector<16x32xf32>
    %c0_147 = arith.constant 0 : index
    %c0_148 = arith.constant 0 : index
    %356 = vector.load %arg21[%c0_147, %c0_148] : memref<1x32xf32, #tpu.memory_space<vmem>>, vector<1x32xf32>
    %357 = vector.broadcast %356 : vector<1x32xf32> to vector<16x32xf32>
    %358 = arith.addf %355, %357 : vector<16x32xf32>
    %cst_149 = arith.constant 5.000000e-01 : f32
    %359 = vector.broadcast %cst_149 : f32 to vector<16x32xf32>
    %360 = arith.mulf %359, %358 : vector<16x32xf32>
    %cst_150 = arith.constant 4.471500e-02 : f32
    %361 = vector.broadcast %cst_150 : f32 to vector<16x32xf32>
    %362 = arith.mulf %361, %358 : vector<16x32xf32>
    %363 = arith.mulf %362, %358 : vector<16x32xf32>
    %364 = arith.mulf %363, %358 : vector<16x32xf32>
    %365 = arith.addf %358, %364 : vector<16x32xf32>
    %cst_151 = arith.constant 0.797884583 : f32
    %366 = vector.broadcast %cst_151 : f32 to vector<16x32xf32>
    %367 = arith.mulf %366, %365 : vector<16x32xf32>
    %368 = math.tanh %367 : vector<16x32xf32>
    %cst_152 = arith.constant 1.000000e+00 : f32
    %369 = vector.broadcast %cst_152 : f32 to vector<16x32xf32>
    %370 = arith.addf %369, %368 : vector<16x32xf32>
    %371 = arith.mulf %360, %370 : vector<16x32xf32>
    %c0_153 = arith.constant 0 : index
    %c0_154 = arith.constant 0 : index
    %372 = vector.load %arg22[%c0_153, %c0_154] : memref<1x32xf32, #tpu.memory_space<vmem>>, vector<1x32xf32>
    %c0_155 = arith.constant 0 : index
    %c0_156 = arith.constant 0 : index
    %373 = vector.load %arg23[%c0_155, %c0_156] : memref<1x32xf32, #tpu.memory_space<vmem>>, vector<1x32xf32>
    %cst_157 = arith.constant dense<0.000000e+00> : vector<16xf32>
    %374 = vector.multi_reduction <add>, %371, %cst_157 [1] : vector<16x32xf32> to vector<16xf32>
    %375 = vector.shape_cast %374 : vector<16xf32> to vector<16x1xf32>
    %cst_158 = arith.constant 3.200000e+01 : f32
    %376 = vector.broadcast %cst_158 : f32 to vector<16x1xf32>
    %377 = arith.divf %375, %376 : vector<16x1xf32>
    %378 = vector.broadcast %377 : vector<16x1xf32> to vector<16x32xf32>
    %379 = arith.subf %371, %378 : vector<16x32xf32>
    %380 = arith.mulf %379, %379 : vector<16x32xf32>
    %cst_159 = arith.constant dense<0.000000e+00> : vector<16xf32>
    %381 = vector.multi_reduction <add>, %380, %cst_159 [1] : vector<16x32xf32> to vector<16xf32>
    %382 = vector.shape_cast %381 : vector<16xf32> to vector<16x1xf32>
    %cst_160 = arith.constant 3.200000e+01 : f32
    %383 = vector.broadcast %cst_160 : f32 to vector<16x1xf32>
    %384 = arith.divf %382, %383 : vector<16x1xf32>
    %385 = vector.broadcast %377 : vector<16x1xf32> to vector<16x32xf32>
    %386 = arith.subf %371, %385 : vector<16x32xf32>
    %cst_161 = arith.constant 1.000000e-10 : f32
    %387 = vector.broadcast %cst_161 : f32 to vector<16x1xf32>
    %388 = arith.addf %384, %387 : vector<16x1xf32>
    %389 = math.rsqrt %388 : vector<16x1xf32>
    %390 = vector.broadcast %389 : vector<16x1xf32> to vector<16x32xf32>
    %391 = arith.mulf %386, %390 : vector<16x32xf32>
    %392 = vector.broadcast %372 : vector<1x32xf32> to vector<16x32xf32>
    %393 = arith.mulf %391, %392 : vector<16x32xf32>
    %394 = vector.broadcast %373 : vector<1x32xf32> to vector<16x32xf32>
    %395 = arith.addf %393, %394 : vector<16x32xf32>
    %c0_162 = arith.constant 0 : index
    %c0_163 = arith.constant 0 : index
    %396 = vector.load %arg24[%c0_162, %c0_163] : memref<32x128xf32, #tpu.memory_space<vmem>>, vector<32x128xf32>
    %cst_164 = arith.constant dense<0.000000e+00> : vector<16x128xf32>
    %397 = tpu.matmul %395, %396, %cst_164 {dimension_numbers = #tpu.dot_dimension_numbers<[1], [0], [0], [1], [0, 0, 1, 1], [], []>} : vector<16x32xf32>, vector<32x128xf32>, vector<16x128xf32> -> vector<16x128xf32>
    %c0_165 = arith.constant 0 : index
    %c0_166 = arith.constant 0 : index
    %398 = vector.load %arg25[%c0_165, %c0_166] : memref<1x128xf32, #tpu.memory_space<vmem>>, vector<1x128xf32>
    %399 = vector.broadcast %398 : vector<1x128xf32> to vector<16x128xf32>
    %400 = arith.addf %397, %399 : vector<16x128xf32>
    %c0_167 = arith.constant 0 : index
    %c0_168 = arith.constant 0 : index
    %401 = vector.load %arg26[%c0_167, %c0_168] : memref<16x128xf32, #tpu.memory_space<vmem>>, vector<16x128xf32>
    tpu.vector_store %arg26[%c0_167, %c0_168], %400 {strides = array<i32>} : memref<16x128xf32, #tpu.memory_space<vmem>>, vector<16x128xf32>,
    return
  }
}

</mosaic_0001>

<llo_original>
// kernel: bert_mlm_forward.1
$region0: #{bert_mlm_forward.1}
  #allocation0 [shape = 'u32[]', space=smem, size = 0x4, offset = 0x4, fixed_abs, tag = 'smem constant byte address 0x4 - core index']
  #allocation1 [shape = 'u32[72,128]{1,0:T(1,128)}', space=vmem, size = 0x9000, scoped, tag = 'internal scratch']
  %s0 = inlined_call_operand.vmem [shape: s32[16,1], index: 0, kind: input, shape index: {}]
  %s1 = inlined_call_operand.vmem [shape: s32[16,1], index: 1, kind: input, shape index: {}]
  %s2 = inlined_call_operand.vmem [shape: s32[1,16], index: 2, kind: input, shape index: {}]
  %s3 = inlined_call_operand.vmem [shape: f32[128,32], index: 3, kind: input, shape index: {}]
  %s4 = inlined_call_operand.vmem [shape: f32[16,32], index: 4, kind: input, shape index: {}]
  %s5 = inlined_call_operand.vmem [shape: f32[2,32], index: 5, kind: input, shape index: {}]
  %s6 = inlined_call_operand.vmem [shape: f32[1,32], index: 6, kind: input, shape index: {}]
  %s7 = inlined_call_operand.vmem [shape: f32[1,32], index: 7, kind: input, shape index: {}]
  %s8 = inlined_call_operand.vmem [shape: f32[2,32,96], index: 8, kind: input, shape index: {}]
  %s9 = inlined_call_operand.vmem [shape: f32[2,1,96], index: 9, kind: input, shape index: {}]
  %s10 = inlined_call_operand.vmem [shape: f32[2,32,32], index: 10, kind: input, shape index: {}]
  %s11 = inlined_call_operand.vmem [shape: f32[2,1,32], index: 11, kind: input, shape index: {}]
  %s12 = inlined_call_operand.vmem [shape: f32[2,1,32], index: 12, kind: input, shape index: {}]
  %s13 = inlined_call_operand.vmem [shape: f32[2,1,32], index: 13, kind: input, shape index: {}]
  %s14 = inlined_call_operand.vmem [shape: f32[2,32,64], index: 14, kind: input, shape index: {}]
  %s15 = inlined_call_operand.vmem [shape: f32[2,1,64], index: 15, kind: input, shape index: {}]
  %s16 = inlined_call_operand.vmem [shape: f32[2,64,32], index: 16, kind: input, shape index: {}]
  %s17 = inlined_call_operand.vmem [shape: f32[2,1,32], index: 17, kind: input, shape index: {}]
  %s18 = inlined_call_operand.vmem [shape: f32[2,1,32], index: 18, kind: input, shape index: {}]
  %s19 = inlined_call_operand.vmem [shape: f32[2,1,32], index: 19, kind: input, shape index: {}]
  %s20 = inlined_call_operand.vmem [shape: f32[32,32], index: 20, kind: input, shape index: {}]
  %s21 = inlined_call_operand.vmem [shape: f32[1,32], index: 21, kind: input, shape index: {}]
  %s22 = inlined_call_operand.vmem [shape: f32[1,32], index: 22, kind: input, shape index: {}]
  %s23 = inlined_call_operand.vmem [shape: f32[1,32], index: 23, kind: input, shape index: {}]
  %s24 = inlined_call_operand.vmem [shape: f32[32,128], index: 24, kind: input, shape index: {}]
  %s25 = inlined_call_operand.vmem [shape: f32[1,128], index: 25, kind: input, shape index: {}]
  %s26 = inlined_call_operand.hbm [shape: f32[16,128], index: 26, kind: output, shape index: {}]
  %s27 = sld [smem:[#allocation0]]
  $region114: #{bert_mlm_forward.1} parent=0
    _
  %s29 = ssub.s32 1, %s27
  %s30 = scalar_select 0, %s29, %s27
  $region1: #{bert_mlm_forward.1} parent=0
    #allocation2 [shape = 'u8[8192]{0}', space=vmem, size = 0x2000, scoped, tag = 'output window, operand 0, single buffered']
    #allocation3 [shape = 's32[1]{0}', space=sflag, size = 0x4, scoped, tag = 'scoped memory for bert_mlm_forward.1']
    %31 = vsyncpa [#allocation3], 0
    // Predicated region
    $region2: #{bert_mlm_forward.1} parent=1 // pred_check
      _
    $region3: #{bert_mlm_forward.1} parent=1 // pred_check_branch
      %33 = sbr.rel (0) target = $region5
    $region4: #{bert_mlm_forward.1} parent=1 // pred_region
      _
    $region5: #{bert_mlm_forward.1} parent=1 // pred_fallthru
      _
    // Predicated region
    $region6: #{bert_mlm_forward.1} parent=1 // pred_check
      _
    $region7: #{bert_mlm_forward.1} parent=1 // pred_check_branch
      %35 = sbr.rel (0) target = $region9
    $region8: #{bert_mlm_forward.1} parent=1 // pred_region
      _
    $region9: #{bert_mlm_forward.1} parent=1 // pred_fallthru
      _
    // Predicated region
    $region10: #{bert_mlm_forward.1} parent=1 // pred_check
      _
    $region11: #{bert_mlm_forward.1} parent=1 // pred_check_branch
      %37 = sbr.rel (0) target = $region13
    $region12: #{bert_mlm_forward.1} parent=1 // pred_region
      _
    $region13: #{bert_mlm_forward.1} parent=1 // pred_fallthru
      _
    // Predicated region
    $region14: #{bert_mlm_forward.1} parent=1 // pred_check
      _
    $region15: #{bert_mlm_forward.1} parent=1 // pred_check_branch
      %39 = sbr.rel (0) target = $region17
    $region16: #{bert_mlm_forward.1} parent=1 // pred_region
      _
    $region17: #{bert_mlm_forward.1} parent=1 // pred_fallthru
      _
    // Predicated region
    $region18: #{bert_mlm_forward.1} parent=1 // pred_check
      _
    $region19: #{bert_mlm_forward.1} parent=1 // pred_check_branch
      %41 = sbr.rel (0) target = $region21
    $region20: #{bert_mlm_forward.1} parent=1 // pred_region
      _
    $region21: #{bert_mlm_forward.1} parent=1 // pred_fallthru
      _
    // Predicated region
    $region22: #{bert_mlm_forward.1} parent=1 // pred_check
      _
    $region23: #{bert_mlm_forward.1} parent=1 // pred_check_branch
      %43 = sbr.rel (0) target = $region25
    $region24: #{bert_mlm_forward.1} parent=1 // pred_region
      _
    $region25: #{bert_mlm_forward.1} parent=1 // pred_fallthru
      _
    // Predicated region
    $region26: #{bert_mlm_forward.1} parent=1 // pred_check
      _
    $region27: #{bert_mlm_forward.1} parent=1 // pred_check_branch
      %45 = sbr.rel (0) target = $region29
    $region28: #{bert_mlm_forward.1} parent=1 // pred_region
      _
    $region29: #{bert_mlm_forward.1} parent=1 // pred_fallthru
      _
    // Predicated region
    $region30: #{bert_mlm_forward.1} parent=1 // pred_check
      _
    $region31: #{bert_mlm_forward.1} parent=1 // pred_check_branch
      %47 = sbr.rel (0) target = $region33
    $region32: #{bert_mlm_forward.1} parent=1 // pred_region
      _
    $region33: #{bert_mlm_forward.1} parent=1 // pred_fallthru
      _
    // Predicated region
    $region34: #{bert_mlm_forward.1} parent=1 // pred_check
      _
    $region35: #{bert_mlm_forward.1} parent=1 // pred_check_branch
      %49 = sbr.rel (0) target = $region37
    $region36: #{bert_mlm_forward.1} parent=1 // pred_region
      _
    $region37: #{bert_mlm_forward.1} parent=1 // pred_fallthru
      _
    // Predicated region
    $region38: #{bert_mlm_forward.1} parent=1 // pred_check
      _
    $region39: #{bert_mlm_forward.1} parent=1 // pred_check_branch
      %51 = sbr.rel (0) target = $region41
    $region40: #{bert_mlm_forward.1} parent=1 // pred_region
      _
    $region41: #{bert_mlm_forward.1} parent=1 // pred_fallthru
      _
    // Predicated region
    $region42: #{bert_mlm_forward.1} parent=1 // pred_check
      _
    $region43: #{bert_mlm_forward.1} parent=1 // pred_check_branch
      %53 = sbr.rel (0) target = $region45
    $region44: #{bert_mlm_forward.1} parent=1 // pred_region
      _
    $region45: #{bert_mlm_forward.1} parent=1 // pred_fallthru
      _
    // Predicated region
    $region46: #{bert_mlm_forward.1} parent=1 // pred_check
      _
    $region47: #{bert_mlm_forward.1} parent=1 // pred_check_branch
      %55 = sbr.rel (0) target = $region49
    $region48: #{bert_mlm_forward.1} parent=1 // pred_region
      _
    $region49: #{bert_mlm_forward.1} parent=1 // pred_fallthru
      _
    // Predicated region
    $region50: #{bert_mlm_forward.1} parent=1 // pred_check
      _
    $region51: #{bert_mlm_forward.1} parent=1 // pred_check_branch
      %57 = sbr.rel (0) target = $region53
    $region52: #{bert_mlm_forward.1} parent=1 // pred_region
      _
    $region53: #{bert_mlm_forward.1} parent=1 // pred_fallthru
      _
    // Predicated region
    $region54: #{bert_mlm_forward.1} parent=1 // pred_check
      _
    $region55: #{bert_mlm_forward.1} parent=1 // pred_check_branch
      %59 = sbr.rel (0) target = $region57
    $region56: #{bert_mlm_forward.1} parent=1 // pred_region
      _
    $region57: #{bert_mlm_forward.1} parent=1 // pred_fallthru
      _
    // Predicated region
    $region58: #{bert_mlm_forward.1} parent=1 // pred_check
      _
    $region59: #{bert_mlm_forward.1} parent=1 // pred_check_branch
      %61 = sbr.rel (0) target = $region61
    $region60: #{bert_mlm_forward.1} parent=1 // pred_region
      _
    $region61: #{bert_mlm_forward.1} parent=1 // pred_fallthru
      _
    // Predicated region
    $region62: #{bert_mlm_forward.1} parent=1 // pred_check
      _
    $region63: #{bert_mlm_forward.1} parent=1 // pred_check_branch
      %63 = sbr.rel (0) target = $region65
    $region64: #{bert_mlm_forward.1} parent=1 // pred_region
      _
    $region65: #{bert_mlm_forward.1} parent=1 // pred_fallthru
      _
    // Predicated region
    $region66: #{bert_mlm_forward.1} parent=1 // pred_check
      _
    $region67: #{bert_mlm_forward.1} parent=1 // pred_check_branch
      %65 = sbr.rel (0) target = $region69
    $region68: #{bert_mlm_forward.1} parent=1 // pred_region
      _
    $region69: #{bert_mlm_forward.1} parent=1 // pred_fallthru
      _
    // Predicated region
    $region70: #{bert_mlm_forward.1} parent=1 // pred_check
      _
    $region71: #{bert_mlm_forward.1} parent=1 // pred_check_branch
      %67 = sbr.rel (0) target = $region73
    $region72: #{bert_mlm_forward.1} parent=1 // pred_region
      _
    $region73: #{bert_mlm_forward.1} parent=1 // pred_fallthru
      _
    // Predicated region
    $region74: #{bert_mlm_forward.1} parent=1 // pred_check
      _
    $region75: #{bert_mlm_forward.1} parent=1 // pred_check_branch
      %69 = sbr.rel (0) target = $region77
    $region76: #{bert_mlm_forward.1} parent=1 // pred_region
      _
    $region77: #{bert_mlm_forward.1} parent=1 // pred_fallthru
      _
    // Predicated region
    $region78: #{bert_mlm_forward.1} parent=1 // pred_check
      _
    $region79: #{bert_mlm_forward.1} parent=1 // pred_check_branch
      %71 = sbr.rel (0) target = $region81
    $region80: #{bert_mlm_forward.1} parent=1 // pred_region
      _
    $region81: #{bert_mlm_forward.1} parent=1 // pred_fallthru
      _
    // Predicated region
    $region82: #{bert_mlm_forward.1} parent=1 // pred_check
      _
    $region83: #{bert_mlm_forward.1} parent=1 // pred_check_branch
      %73 = sbr.rel (0) target = $region85
    $region84: #{bert_mlm_forward.1} parent=1 // pred_region
      _
    $region85: #{bert_mlm_forward.1} parent=1 // pred_fallthru
      _
    // Predicated region
    $region86: #{bert_mlm_forward.1} parent=1 // pred_check
      _
    $region87: #{bert_mlm_forward.1} parent=1 // pred_check_branch
      %75 = sbr.rel (0) target = $region89
    $region88: #{bert_mlm_forward.1} parent=1 // pred_region
      _
    $region89: #{bert_mlm_forward.1} parent=1 // pred_fallthru
      _
    // Predicated region
    $region90: #{bert_mlm_forward.1} parent=1 // pred_check
      _
    $region91: #{bert_mlm_forward.1} parent=1 // pred_check_branch
      %77 = sbr.rel (0) target = $region93
    $region92: #{bert_mlm_forward.1} parent=1 // pred_region
      _
    $region93: #{bert_mlm_forward.1} parent=1 // pred_fallthru
      _
    // Predicated region
    $region94: #{bert_mlm_forward.1} parent=1 // pred_check
      _
    $region95: #{bert_mlm_forward.1} parent=1 // pred_check_branch
      %79 = sbr.rel (0) target = $region97
    $region96: #{bert_mlm_forward.1} parent=1 // pred_region
      _
    $region97: #{bert_mlm_forward.1} parent=1 // pred_fallthru
      _
    // Predicated region
    $region98: #{bert_mlm_forward.1} parent=1 // pred_check
      _
    $region99: #{bert_mlm_forward.1} parent=1 // pred_check_branch
      %81 = sbr.rel (0) target = $region101
    $region100: #{bert_mlm_forward.1} parent=1 // pred_region
      _
    $region101: #{bert_mlm_forward.1} parent=1 // pred_fallthru
      _
    // Predicated region
    $region102: #{bert_mlm_forward.1} parent=1 // pred_check
      _
    $region103: #{bert_mlm_forward.1} parent=1 // pred_check_branch
      %83 = sbr.rel (0) target = $region105
    $region104: #{bert_mlm_forward.1} parent=1 // pred_region
      _
    $region105: #{bert_mlm_forward.1} parent=1 // pred_fallthru
      _
    %v84 = vlaneseq
    %v85 = vshrl.u32 %v84, 7
    %v86 = vadd.s32 %v85, 8
    %v87 = vadd.s32 %v85, 16
    %v88 = vadd.s32 %v85, 24
    %v89 = vadd.s32 %v85, 32
    %v90 = vadd.s32 %v85, 40
    %v91 = vadd.s32 %v85, 48
    %v92 = vadd.s32 %v85, 56
    %v93 = vshrl.u32 %v85, 4
    %v94 = vshrl.u32 %v86, 4
    %v95 = vshrl.u32 %v87, 4
    %v96 = vshrl.u32 %v88, 4
    %v97 = vshrl.u32 %v89, 4
    %v98 = vshrl.u32 %v90, 4
    %v99 = vshrl.u32 %v91, 4
    %v100 = vshrl.u32 %v92, 4
    %v101 = vlaneseq
    %v102 = vand.u32 %v101, 127
    %v103 = vshrl.u32 %v102, 3
    %vm104 = vcmp.eq.s32.totalorder %v93, %v103
    %vm105 = vcmp.eq.s32.totalorder %v94, %v103
    %vm106 = vcmp.eq.s32.totalorder %v95, %v103
    %vm107 = vcmp.eq.s32.totalorder %v96, %v103
    %vm108 = vcmp.eq.s32.totalorder %v97, %v103
    %vm109 = vcmp.eq.s32.totalorder %v98, %v103
    %vm110 = vcmp.eq.s32.totalorder %v99, %v103
    %vm111 = vcmp.eq.s32.totalorder %v100, %v103
    %v112 = vsel %vm104, 1, 0
    %v113 = vsel %vm105, 1, 0
    %v114 = vsel %vm106, 1, 0
    %v115 = vsel %vm107, 1, 0
    %v116 = vsel %vm108, 1, 0
    %v117 = vsel %vm109, 1, 0
    %v118 = vsel %vm110, 1, 0
    %v119 = vsel %vm111, 1, 0
    %v120 = vcvt.s32.f32 %v112
    %v121 = vcvt.s32.f32 %v113
    %v122 = vcvt.s32.f32 %v114
    %v123 = vcvt.s32.f32 %v115
    %v124 = vcvt.s32.f32 %v116
    %v125 = vcvt.s32.f32 %v117
    %v126 = vcvt.s32.f32 %v118
    %v127 = vcvt.s32.f32 %v119
    %vm128 = vcmp.eq.s32.totalorder %v103, 0
    %v129 = vsel %vm128, 1, 0
    %v130 = vcvt.s32.f32 %v129
    %vm131 = vcmp.eq.s32.totalorder %v103, 1
    %v132 = vsel %vm131, 1, 0
    %v133 = vcvt.s32.f32 %v132
    %vm134 = vcmp.eq.s32.totalorder %v103, 2
    %v135 = vsel %vm134, 1, 0
    %v136 = vcvt.s32.f32 %v135
    %vm137 = vcmp.eq.s32.totalorder %v103, 3
    %v138 = vsel %vm137, 1, 0
    %v139 = vcvt.s32.f32 %v138
    %v140 = vand.u32 %v85, 15
    %v141 = vand.u32 %v86, 15
    %v142 = vand.u32 %v87, 15
    %v143 = vand.u32 %v88, 15
    %v144 = vand.u32 %v89, 15
    %v145 = vand.u32 %v90, 15
    %v146 = vand.u32 %v91, 15
    %v147 = vand.u32 %v92, 15
    %v148 = vshrl.u32 %v140, 3
    %v149 = vshrl.u32 %v141, 3
    %v150 = vshrl.u32 %v142, 3
    %v151 = vshrl.u32 %v143, 3
    %v152 = vshrl.u32 %v144, 3
    %v153 = vshrl.u32 %v145, 3
    %v154 = vshrl.u32 %v146, 3
    %v155 = vshrl.u32 %v147, 3
    %v156 = vld [vmem:[%s2] sm:$0x1]
    %vm157 = vcmp.gt.s32.totalorder %v156, 0
    %vm158 = vcmp.eq.s32.totalorder %v148, %v103
    %vm159 = vcmp.eq.s32.totalorder %v149, %v103
    %vm160 = vcmp.eq.s32.totalorder %v150, %v103
    %vm161 = vcmp.eq.s32.totalorder %v151, %v103
    %vm162 = vcmp.eq.s32.totalorder %v152, %v103
    %vm163 = vcmp.eq.s32.totalorder %v153, %v103
    %vm164 = vcmp.eq.s32.totalorder %v154, %v103
    %vm165 = vcmp.eq.s32.totalorder %v155, %v103
    %v166 = vsel %vm157, 1, 0
    %v167 = vperm.slane %v166, 0
    %vm168 = vcmp.eq.s32.totalorder %v167, 1
    %vm169 = vmand %vm158, %vm168
    %vm170 = vmand %vm159, %vm168
    %vm171 = vmand %vm160, %vm168
    %vm172 = vmand %vm161, %vm168
    %vm173 = vmand %vm162, %vm168
    %vm174 = vmand %vm163, %vm168
    %vm175 = vmand %vm164, %vm168
    %vm176 = vmand %vm165, %vm168
    %v177 = vsel %vm169, 0.0, -1e+09
    %v178 = vsel %vm170, 0.0, -1e+09
    %v179 = vsel %vm171, 0.0, -1e+09
    %v180 = vsel %vm172, 0.0, -1e+09
    %v181 = vsel %vm173, 0.0, -1e+09
    %v182 = vsel %vm174, 0.0, -1e+09
    %v183 = vsel %vm175, 0.0, -1e+09
    %v184 = vsel %vm176, 0.0, -1e+09
    %v185 = vld [vmem:[%s0] sm:$0xff]
    %v186 = vld [vmem:[%s0 + $0x8] sm:$0xff]
    %187 = vset.pattern.permute.xlu0 0
    %188 = vperm.xlu0 %187, %v185
    %v189 = vpop.permute.xlu0 %188
    %190 = vset.pattern.permute.xlu0 0
    %191 = vperm.xlu0 %190, %v186
    %v192 = vpop.permute.xlu0 %191
    %vm193 = vcmp.eq.s32.totalorder %v189, %v102
    %vm194 = vcmp.eq.s32.totalorder %v192, %v102
    %v195 = vsel %vm193, 1, 0
    %v196 = vsel %vm194, 1, 0
    %v197 = vcvt.s32.f32 %v195
    %v198 = vcvt.s32.f32 %v196
    %v199 = vld [vmem:[%s3] sm:$0xff]
    %v200 = vld [vmem:[%s3 + $0x8] sm:$0xff]
    %v201 = vld [vmem:[%s3 + $0x10] sm:$0xff]
    %v202 = vld [vmem:[%s3 + $0x18] sm:$0xff]
    %v203 = vld [vmem:[%s3 + $0x20] sm:$0xff]
    %v204 = vld [vmem:[%s3 + $0x28] sm:$0xff]
    %v205 = vld [vmem:[%s3 + $0x30] sm:$0xff]
    %v206 = vld [vmem:[%s3 + $0x38] sm:$0xff]
    %v207 = vld [vmem:[%s3 + $0x40] sm:$0xff]
    %v208 = vld [vmem:[%s3 + $0x48] sm:$0xff]
    %v209 = vld [vmem:[%s3 + $0x50] sm:$0xff]
    %v210 = vld [vmem:[%s3 + $0x58] sm:$0xff]
    %v211 = vld [vmem:[%s3 + $0x60] sm:$0xff]
    %v212 = vld [vmem:[%s3 + $0x68] sm:$0xff]
    %v213 = vld [vmem:[%s3 + $0x70] sm:$0xff]
    %v214 = vld [vmem:[%s3 + $0x78] sm:$0xff]
    %v215 = vand.u32 %v85, 7
    %v216 = vand.u32 %v86, 7
    %vm217 = vcmp.eq.s32.totalorder %v215, %v102
    %vm218 = vcmp.eq.s32.totalorder %v216, %v102
    %v219 = vsel %vm217, 1, 0
    %v220 = vsel %vm218, 1, 0
    %v221 = vcvt.s32.f32 %v219
    %v222 = vcvt.s32.f32 %v220
    %v223 = vld [vmem:[%s4] sm:$0xff]
    %v224 = vld [vmem:[%s4 + $0x8] sm:$0xff]
    %vm225 = vcmask 130048
    %v227 = vsel %vm225, %v221, 0
    %v230 = vsel %vm225, %v222, 0
    %232 = vmatpush.msra.mxu0 0.0
    %233 = vmatpush.msra.mxu0 0.0
    %234 = vmatpush.msra.mxu0 0.0
    %235 = vmatpush.msra.mxu0 0.0
    %236 = vmatpush.msra.mxu0 0.0
    %237 = vmatpush.msra.mxu0 0.0
    %238 = vmatpush.msra.mxu0 0.0
    %239 = vmatpush.msra.mxu0 0.0
    %240 = vmatpush.msra.mxu0 0.0
    %241 = vmatpush.msra.mxu0 0.0
    %242 = vmatpush.msra.mxu0 0.0
    %243 = vmatpush.msra.mxu0 0.0
    %244 = vmatpush.msra.mxu0 0.0
    %245 = vmatpush.msra.mxu0 0.0
    %246 = vmatpush.msra.mxu0 %v224
    %247 = vmatpush.msra.mxu0 %v223
    %248 = vmatmul.f32.gmra.mxu0 %v227
    %v249 = vpop.f32.mrf.mxu0
    %v250 = vadd.f32 0.0, %v249
    %251 = vmatmul.f32.gmra.mxu0 %v230
    %v252 = vpop.f32.mrf.mxu0
    %v253 = vadd.f32 0.0, %v252
    %254 = vdwg.mxu0
    %255 = vmatpush.msra.mxu0 %v214
    %256 = vmatpush.msra.mxu0 %v213
    %257 = vmatpush.msra.mxu0 %v212
    %258 = vmatpush.msra.mxu0 %v211
    %259 = vmatpush.msra.mxu0 %v210
    %260 = vmatpush.msra.mxu0 %v209
    %261 = vmatpush.msra.mxu0 %v208
    %262 = vmatpush.msra.mxu0 %v207
    %263 = vmatpush.msra.mxu0 %v206
    %264 = vmatpush.msra.mxu0 %v205
    %265 = vmatpush.msra.mxu0 %v204
    %266 = vmatpush.msra.mxu0 %v203
    %267 = vmatpush.msra.mxu0 %v202
    %268 = vmatpush.msra.mxu0 %v201
    %269 = vmatpush.msra.mxu0 %v200
    %270 = vmatpush.msra.mxu0 %v199
    %271 = vmatmul.f32.gmra.mxu0 %v197
    %v272 = vpop.f32.mrf.mxu0
    %v273 = vadd.f32 %v250, %v272
    %274 = vmatmul.f32.gmra.mxu0 %v198
    %v275 = vpop.f32.mrf.mxu0
    %v276 = vadd.f32 %v253, %v275
    %277 = vdwg.mxu0
    %v278 = vld [vmem:[%s1] sm:$0xff]
    %v279 = vld [vmem:[%s1 + $0x8] sm:$0xff]
    %280 = vset.pattern.permute.xlu0 0
    %281 = vperm.xlu0 %280, %v278
    %v282 = vpop.permute.xlu0 %281
    %283 = vset.pattern.permute.xlu0 0
    %284 = vperm.xlu0 %283, %v279
    %v285 = vpop.permute.xlu0 %284
    %vm286 = vcmp.eq.s32.totalorder %v282, %v102
    %vm287 = vcmp.eq.s32.totalorder %v285, %v102
    %v288 = vsel %vm286, 1, 0
    %v289 = vsel %vm287, 1, 0
    %v290 = vcvt.s32.f32 %v288
    %v291 = vcvt.s32.f32 %v289
    %v292 = vld [vmem:[%s5] sm:$0x3]
    %vm293 = vcmask 15360
    %v295 = vsel %vm293, %v290, 0
    %v298 = vsel %vm293, %v291, 0
    %vm300 = vcmask 1041408
    %v302 = vsel %vm300, %v292, 0
    %304 = vmatpush.msra.mxu0 0.0
    %305 = vmatpush.msra.mxu0 0.0
    %306 = vmatpush.msra.mxu0 0.0
    %307 = vmatpush.msra.mxu0 0.0
    %308 = vmatpush.msra.mxu0 0.0
    %309 = vmatpush.msra.mxu0 0.0
    %310 = vmatpush.msra.mxu0 0.0
    %311 = vmatpush.msra.mxu0 0.0
    %312 = vmatpush.msra.mxu0 0.0
    %313 = vmatpush.msra.mxu0 0.0
    %314 = vmatpush.msra.mxu0 0.0
    %315 = vmatpush.msra.mxu0 0.0
    %316 = vmatpush.msra.mxu0 0.0
    %317 = vmatpush.msra.mxu0 0.0
    %318 = vmatpush.msra.mxu0 0.0
    %319 = vmatpush.msra.mxu0 %v302
    %320 = vmatmul.f32.gmra.mxu0 %v295
    %v321 = vpop.f32.mrf.mxu0
    %v322 = vadd.f32 0.0, %v321
    %323 = vmatmul.f32.gmra.mxu0 %v298
    %v324 = vpop.f32.mrf.mxu0
    %v325 = vadd.f32 0.0, %v324
    %326 = vdwg.mxu0
    %v327 = vadd.f32 %v273, %v322
    %v328 = vadd.f32 %v276, %v325
    %v329 = vld [vmem:[%s6] sm:$0x1]
    %v330 = vld [vmem:[%s7] sm:$0x1]
    %vm331 = vcmask 261120
    %v332 = vsel %vm331, %v327, 0.0
    %333 = vadd.xlane.f32.xlu0 %v332
    %v334 = vpop.xlane.xlu0 %333
    %v335 = vsel %vm331, %v328, 0.0
    %336 = vadd.xlane.f32.xlu0 %v335
    %v337 = vpop.xlane.xlu0 %336
    %v338 = vrcp.pop 32.0
    %v339 = vmul.f32 32.0, %v338
    %v340 = vsub.f32 1.0, %v339
    %v341 = vmul.f32 %v338, %v340
    %v342 = vadd.f32 %v338, %v341
    %vm343 = vweird.f32 %v338
    %v344 = vsel %vm343, %v338, %v342
    %v345 = vmul.f32 %v334, %v344
    %v346 = vmul.f32 %v337, %v344
    %v347 = vsub.f32 %v327, %v345
    %v348 = vsub.f32 %v328, %v346
    %v349 = vmul.f32 %v347, %v347
    %v350 = vmul.f32 %v348, %v348
    %v351 = vsel %vm331, %v349, 0.0
    %352 = vadd.xlane.f32.xlu0 %v351
    %v353 = vpop.xlane.xlu0 %352
    %v354 = vsel %vm331, %v350, 0.0
    %355 = vadd.xlane.f32.xlu0 %v354
    %v356 = vpop.xlane.xlu0 %355
    %v357 = vmul.f32 %v353, %v344
    %v358 = vmul.f32 %v356, %v344
    %v359 = vadd.f32 %v357, 1e-12
    %v360 = vadd.f32 %v358, 1e-12
    %v361 = vrsqrt.pop %v359
    %v362 = vmul.f32 %v361, %v359
    %v363 = vmul.f32 %v362, %v361
    %v364 = vmul.f32 0.5, %v363
    %v365 = vsub.f32 1.5, %v364
    %v366 = vmul.f32 %v361, %v365
    %vm367 = vweird.f32 %v359
    %vm368 = vweird.f32 %v361
    %vm369 = vmor %vm367, %vm368
    %v370 = vsel %vm369, %v361, %v366
    %v371 = vrsqrt.pop %v360
    %v372 = vmul.f32 %v371, %v360
    %v373 = vmul.f32 %v372, %v371
    %v374 = vmul.f32 0.5, %v373
    %v375 = vsub.f32 1.5, %v374
    %v376 = vmul.f32 %v371, %v375
    %vm377 = vweird.f32 %v360
    %vm378 = vweird.f32 %v371
    %vm379 = vmor %vm377, %vm378
    %v380 = vsel %vm379, %v371, %v376
    %v381 = vmul.f32 %v347, %v370
    %v382 = vmul.f32 %v348, %v380
    %v384 = vperm.slane %v329, 0
    %v386 = vmul.f32 %v381, %v384
    %v387 = vmul.f32 %v382, %v384
    %v389 = vperm.slane %v330, 0
    %v391 = vadd.f32 %v386, %v389
    %v392 = vadd.f32 %v387, %v389
    %v393 = vld [vmem:[%s8] sm:$0xff]
    %v394 = vld [vmem:[%s8 + $0x8] sm:$0xff]
    %v395 = vld [vmem:[%s8 + $0x10] sm:$0xff]
    %v396 = vld [vmem:[%s8 + $0x18] sm:$0xff]
    %v397 = vld [vmem:[%s9] sm:$0x1]
    %v399 = vperm.slane %v397, 0
    %v402 = vsel %vm331, %v391, 0
    %v405 = vsel %vm331, %v392, 0
    %407 = vmatpush.msra.mxu0 0.0
    %408 = vmatpush.msra.mxu0 0.0
    %409 = vmatpush.msra.mxu0 0.0
    %410 = vmatpush.msra.mxu0 0.0
    %411 = vmatpush.msra.mxu0 0.0
    %412 = vmatpush.msra.mxu0 0.0
    %413 = vmatpush.msra.mxu0 0.0
    %414 = vmatpush.msra.mxu0 0.0
    %415 = vmatpush.msra.mxu0 0.0
    %416 = vmatpush.msra.mxu0 0.0
    %417 = vmatpush.msra.mxu0 0.0
    %418 = vmatpush.msra.mxu0 0.0
    %419 = vmatpush.msra.mxu0 %v396
    %420 = vmatpush.msra.mxu0 %v395
    %421 = vmatpush.msra.mxu0 %v394
    %422 = vmatpush.msra.mxu0 %v393
    %423 = vmatmul.f32.gmra.mxu0 %v402
    %v424 = vpop.f32.mrf.mxu0
    %v425 = vadd.f32 %v399, %v424
    %426 = vmatmul.f32.gmra.mxu0 %v405
    %v427 = vpop.f32.mrf.mxu0
    %v428 = vadd.f32 %v399, %v427
    %429 = vdwg.mxu0
    %v430 = vmul.f32 %v425, %v120
    %v431 = vmul.f32 %v428, %v121
    %v432 = vmul.f32 %v425, %v122
    %v433 = vmul.f32 %v428, %v123
    %v434 = vmul.f32 %v425, %v124
    %v435 = vmul.f32 %v428, %v125
    %v436 = vmul.f32 %v425, %v126
    %v437 = vmul.f32 %v428, %v127
    %440 = vrot.lane.b32.xlu0 %v425, 96
    %v441 = vpop.permute.xlu0 %440
    %442 = vrot.lane.b32.xlu0 %v428, 96
    %v443 = vpop.permute.xlu0 %442
    %v445 = vsel %vm331, %v430, 0
    %v448 = vsel %vm331, %v431, 0
    %v451 = vsel %vm331, %v432, 0
    %v454 = vsel %vm331, %v433, 0
    %v457 = vsel %vm331, %v434, 0
    %v460 = vsel %vm331, %v435, 0
    %v463 = vsel %vm331, %v436, 0
    %v466 = vsel %vm331, %v437, 0
    %v468 = vsel %vm331, %v441, 0
    %v470 = vsel %vm331, %v443, 0
    %472 = vmatpush.xpose.msra.mxu0 0.0
    %473 = vmatpush.xpose.msra.mxu0 0.0
    %474 = vmatpush.xpose.msra.mxu0 0.0
    %475 = vmatpush.xpose.msra.mxu0 0.0
    %476 = vmatpush.xpose.msra.mxu0 0.0
    %477 = vmatpush.xpose.msra.mxu0 0.0
    %478 = vmatpush.xpose.msra.mxu0 0.0
    %479 = vmatpush.xpose.msra.mxu0 0.0
    %480 = vmatpush.xpose.msra.mxu0 0.0
    %481 = vmatpush.xpose.msra.mxu0 0.0
    %482 = vmatpush.xpose.msra.mxu0 0.0
    %483 = vmatpush.xpose.msra.mxu0 0.0
    %484 = vmatpush.xpose.msra.mxu0 0.0
    %485 = vmatpush.xpose.msra.mxu0 0.0
    %486 = vmatpush.xpose.msra.mxu0 %v470
    %487 = vmatpush.xpose.msra.mxu0 %v468
    %488 = vmatmul.f32.gmra.mxu0 %v445
    %v489 = vpop.f32.mrf.mxu0
    %v490 = vadd.f32 %v177, %v489
    %491 = vmatmul.f32.gmra.mxu0 %v448
    %v492 = vpop.f32.mrf.mxu0
    %v493 = vadd.f32 %v178, %v492
    %494 = vmatmul.f32.gmra.mxu0 %v451
    %v495 = vpop.f32.mrf.mxu0
    %v496 = vadd.f32 %v179, %v495
    %497 = vmatmul.f32.gmra.mxu0 %v454
    %v498 = vpop.f32.mrf.mxu0
    %v499 = vadd.f32 %v180, %v498
    %500 = vmatmul.f32.gmra.mxu0 %v457
    %v501 = vpop.f32.mrf.mxu0
    %v502 = vadd.f32 %v181, %v501
    %503 = vmatmul.f32.gmra.mxu0 %v460
    %v504 = vpop.f32.mrf.mxu0
    %v505 = vadd.f32 %v182, %v504
    %506 = vmatmul.f32.gmra.mxu0 %v463
    %v507 = vpop.f32.mrf.mxu0
    %v508 = vadd.f32 %v183, %v507
    %509 = vmatmul.f32.gmra.mxu0 %v466
    %v510 = vpop.f32.mrf.mxu0
    %v511 = vadd.f32 %v184, %v510
    %512 = vdwg.mxu0
    %v513 = vsel %vm225, %v490, -inf
    %514 = vmax.xlane.f32.xlu0 %v513
    %v515 = vpop.xlane.xlu0 %514
    %v516 = vsel %vm225, %v493, -inf
    %517 = vmax.xlane.f32.xlu0 %v516
    %v518 = vpop.xlane.xlu0 %517
    %v519 = vsel %vm225, %v496, -inf
    %520 = vmax.xlane.f32.xlu0 %v519
    %v521 = vpop.xlane.xlu0 %520
    %v522 = vsel %vm225, %v499, -inf
    %523 = vmax.xlane.f32.xlu0 %v522
    %v524 = vpop.xlane.xlu0 %523
    %v525 = vsel %vm225, %v502, -inf
    %526 = vmax.xlane.f32.xlu0 %v525
    %v527 = vpop.xlane.xlu0 %526
    %v528 = vsel %vm225, %v505, -inf
    %529 = vmax.xlane.f32.xlu0 %v528
    %v530 = vpop.xlane.xlu0 %529
    %v531 = vsel %vm225, %v508, -inf
    %532 = vmax.xlane.f32.xlu0 %v531
    %v533 = vpop.xlane.xlu0 %532
    %v534 = vsel %vm225, %v511, -inf
    %535 = vmax.xlane.f32.xlu0 %v534
    %v536 = vpop.xlane.xlu0 %535
    %v537 = vsub.f32 %v490, %v515
    %v538 = vsub.f32 %v493, %v518
    %v539 = vsub.f32 %v496, %v521
    %v540 = vsub.f32 %v499, %v524
    %v541 = vsub.f32 %v502, %v527
    %v542 = vsub.f32 %v505, %v530
    %v543 = vsub.f32 %v508, %v533
    %v544 = vsub.f32 %v511, %v536
    %v545 = vmul.f32 %v537, 1.442695
    %v546 = vpow.pop %v545
    %v547 = vmul.f32 %v538, 1.442695
    %v548 = vpow.pop %v547
    %v549 = vmul.f32 %v539, 1.442695
    %v550 = vpow.pop %v549
    %v551 = vmul.f32 %v540, 1.442695
    %v552 = vpow.pop %v551
    %v553 = vmul.f32 %v541, 1.442695
    %v554 = vpow.pop %v553
    %v555 = vmul.f32 %v542, 1.442695
    %v556 = vpow.pop %v555
    %v557 = vmul.f32 %v543, 1.442695
    %v558 = vpow.pop %v557
    %v559 = vmul.f32 %v544, 1.442695
    %v560 = vpow.pop %v559
    %v561 = vsel %vm225, %v546, 0.0
    %562 = vadd.xlane.f32.xlu0 %v561
    %v563 = vpop.xlane.xlu0 %562
    %v564 = vsel %vm225, %v548, 0.0
    %565 = vadd.xlane.f32.xlu0 %v564
    %v566 = vpop.xlane.xlu0 %565
    %v567 = vsel %vm225, %v550, 0.0
    %568 = vadd.xlane.f32.xlu0 %v567
    %v569 = vpop.xlane.xlu0 %568
    %v570 = vsel %vm225, %v552, 0.0
    %571 = vadd.xlane.f32.xlu0 %v570
    %v572 = vpop.xlane.xlu0 %571
    %v573 = vsel %vm225, %v554, 0.0
    %574 = vadd.xlane.f32.xlu0 %v573
    %v575 = vpop.xlane.xlu0 %574
    %v576 = vsel %vm225, %v556, 0.0
    %577 = vadd.xlane.f32.xlu0 %v576
    %v578 = vpop.xlane.xlu0 %577
    %v579 = vsel %vm225, %v558, 0.0
    %580 = vadd.xlane.f32.xlu0 %v579
    %v581 = vpop.xlane.xlu0 %580
    %v582 = vsel %vm225, %v560, 0.0
    %583 = vadd.xlane.f32.xlu0 %v582
    %v584 = vpop.xlane.xlu0 %583
    %v585 = vrcp.pop %v563
    %v586 = vmul.f32 %v563, %v585
    %v587 = vsub.f32 1.0, %v586
    %v588 = vmul.f32 %v585, %v587
    %v589 = vadd.f32 %v585, %v588
    %vm590 = vweird.f32 %v563
    %vm591 = vweird.f32 %v585
    %vm592 = vmor %vm590, %vm591
    %v593 = vsel %vm592, %v585, %v589
    %v594 = vand.u32 2147483647, %v563
    %vm595 = vcmp.eq.f32.partialorder %v594, 8.507059e+37
    %v596 = vand.u32 %v563, 2147483648
    %v597 = vor.u32 1.1754944e-38, %v596
    %v598 = vsel %vm595, %v597, %v593
    %v599 = vmul.f32 %v546, %v598
    %v600 = vrcp.pop %v566
    %v601 = vmul.f32 %v566, %v600
    %v602 = vsub.f32 1.0, %v601
    %v603 = vmul.f32 %v600, %v602
    %v604 = vadd.f32 %v600, %v603
    %vm605 = vweird.f32 %v566
    %vm606 = vweird.f32 %v600
    %vm607 = vmor %vm605, %vm606
    %v608 = vsel %vm607, %v600, %v604
    %v609 = vand.u32 2147483647, %v566
    %vm610 = vcmp.eq.f32.partialorder %v609, 8.507059e+37
    %v611 = vand.u32 %v566, 2147483648
    %v612 = vor.u32 1.1754944e-38, %v611
    %v613 = vsel %vm610, %v612, %v608
    %v614 = vmul.f32 %v548, %v613
    %v615 = vrcp.pop %v569
    %v616 = vmul.f32 %v569, %v615
    %v617 = vsub.f32 1.0, %v616
    %v618 = vmul.f32 %v615, %v617
    %v619 = vadd.f32 %v615, %v618
    %vm620 = vweird.f32 %v569
    %vm621 = vweird.f32 %v615
    %vm622 = vmor %vm620, %vm621
    %v623 = vsel %vm622, %v615, %v619
    %v624 = vand.u32 2147483647, %v569
    %vm625 = vcmp.eq.f32.partialorder %v624, 8.507059e+37
    %v626 = vand.u32 %v569, 2147483648
    %v627 = vor.u32 1.1754944e-38, %v626
    %v628 = vsel %vm625, %v627, %v623
    %v629 = vmul.f32 %v550, %v628
    %v630 = vrcp.pop %v572
    %v631 = vmul.f32 %v572, %v630
    %v632 = vsub.f32 1.0, %v631
    %v633 = vmul.f32 %v630, %v632
    %v634 = vadd.f32 %v630, %v633
    %vm635 = vweird.f32 %v572
    %vm636 = vweird.f32 %v630
    %vm637 = vmor %vm635, %vm636
    %v638 = vsel %vm637, %v630, %v634
    %v639 = vand.u32 2147483647, %v572
    %vm640 = vcmp.eq.f32.partialorder %v639, 8.507059e+37
    %v641 = vand.u32 %v572, 2147483648
    %v642 = vor.u32 1.1754944e-38, %v641
    %v643 = vsel %vm640, %v642, %v638
    %v644 = vmul.f32 %v552, %v643
    %v645 = vrcp.pop %v575
    %v646 = vmul.f32 %v575, %v645
    %v647 = vsub.f32 1.0, %v646
    %v648 = vmul.f32 %v645, %v647
    %v649 = vadd.f32 %v645, %v648
    %vm650 = vweird.f32 %v575
    %vm651 = vweird.f32 %v645
    %vm652 = vmor %vm650, %vm651
    %v653 = vsel %vm652, %v645, %v649
    %v654 = vand.u32 2147483647, %v575
    %vm655 = vcmp.eq.f32.partialorder %v654, 8.507059e+37
    %v656 = vand.u32 %v575, 2147483648
    %v657 = vor.u32 1.1754944e-38, %v656
    %v658 = vsel %vm655, %v657, %v653
    %v659 = vmul.f32 %v554, %v658
    %v660 = vrcp.pop %v578
    %v661 = vmul.f32 %v578, %v660
    %v662 = vsub.f32 1.0, %v661
    %v663 = vmul.f32 %v660, %v662
    %v664 = vadd.f32 %v660, %v663
    %vm665 = vweird.f32 %v578
    %vm666 = vweird.f32 %v660
    %vm667 = vmor %vm665, %vm666
    %v668 = vsel %vm667, %v660, %v664
    %v669 = vand.u32 2147483647, %v578
    %vm670 = vcmp.eq.f32.partialorder %v669, 8.507059e+37
    %v671 = vand.u32 %v578, 2147483648
    %v672 = vor.u32 1.1754944e-38, %v671
    %v673 = vsel %vm670, %v672, %v668
    %v674 = vmul.f32 %v556, %v673
    %v675 = vrcp.pop %v581
    %v676 = vmul.f32 %v581, %v675
    %v677 = vsub.f32 1.0, %v676
    %v678 = vmul.f32 %v675, %v677
    %v679 = vadd.f32 %v675, %v678
    %vm680 = vweird.f32 %v581
    %vm681 = vweird.f32 %v675
    %vm682 = vmor %vm680, %vm681
    %v683 = vsel %vm682, %v675, %v679
    %v684 = vand.u32 2147483647, %v581
    %vm685 = vcmp.eq.f32.partialorder %v684, 8.507059e+37
    %v686 = vand.u32 %v581, 2147483648
    %v687 = vor.u32 1.1754944e-38, %v686
    %v688 = vsel %vm685, %v687, %v683
    %v689 = vmul.f32 %v558, %v688
    %v690 = vrcp.pop %v584
    %v691 = vmul.f32 %v584, %v690
    %v692 = vsub.f32 1.0, %v691
    %v693 = vmul.f32 %v690, %v692
    %v694 = vadd.f32 %v690, %v693
    %vm695 = vweird.f32 %v584
    %vm696 = vweird.f32 %v690
    %vm697 = vmor %vm695, %vm696
    %v698 = vsel %vm697, %v690, %v694
    %v699 = vand.u32 2147483647, %v584
    %vm700 = vcmp.eq.f32.partialorder %v699, 8.507059e+37
    %v701 = vand.u32 %v584, 2147483648
    %v702 = vor.u32 1.1754944e-38, %v701
    %v703 = vsel %vm700, %v702, %v698
    %v704 = vmul.f32 %v560, %v703
    %705 = vrot.lane.b32.xlu0 %v425, 64
    %v706 = vpop.permute.xlu0 %705
    %707 = vrot.lane.b32.xlu0 %v428, 64
    %v708 = vpop.permute.xlu0 %707
    %v712 = vsel %vm225, %v599, 0
    %v715 = vsel %vm225, %v614, 0
    %v718 = vsel %vm225, %v629, 0
    %v721 = vsel %vm225, %v644, 0
    %v724 = vsel %vm225, %v659, 0
    %v727 = vsel %vm225, %v674, 0
    %v730 = vsel %vm225, %v689, 0
    %v733 = vsel %vm225, %v704, 0
    %735 = vmatpush.msra.mxu0 0.0
    %736 = vmatpush.msra.mxu0 0.0
    %737 = vmatpush.msra.mxu0 0.0
    %738 = vmatpush.msra.mxu0 0.0
    %739 = vmatpush.msra.mxu0 0.0
    %740 = vmatpush.msra.mxu0 0.0
    %741 = vmatpush.msra.mxu0 0.0
    %742 = vmatpush.msra.mxu0 0.0
    %743 = vmatpush.msra.mxu0 0.0
    %744 = vmatpush.msra.mxu0 0.0
    %745 = vmatpush.msra.mxu0 0.0
    %746 = vmatpush.msra.mxu0 0.0
    %747 = vmatpush.msra.mxu0 0.0
    %748 = vmatpush.msra.mxu0 0.0
    %749 = vmatpush.msra.mxu0 %v708
    %750 = vmatpush.msra.mxu0 %v706
    %751 = vmatmul.f32.gmra.mxu0 %v712
    %v752 = vpop.f32.mrf.mxu0
    %v753 = vadd.f32 0.0, %v752
    %754 = vmatmul.f32.gmra.mxu0 %v715
    %v755 = vpop.f32.mrf.mxu0
    %v756 = vadd.f32 0.0, %v755
    %757 = vmatmul.f32.gmra.mxu0 %v718
    %v758 = vpop.f32.mrf.mxu0
    %v759 = vadd.f32 0.0, %v758
    %760 = vmatmul.f32.gmra.mxu0 %v721
    %v761 = vpop.f32.mrf.mxu0
    %v762 = vadd.f32 0.0, %v761
    %763 = vmatmul.f32.gmra.mxu0 %v724
    %v764 = vpop.f32.mrf.mxu0
    %v765 = vadd.f32 0.0, %v764
    %766 = vmatmul.f32.gmra.mxu0 %v727
    %v767 = vpop.f32.mrf.mxu0
    %v768 = vadd.f32 0.0, %v767
    %769 = vmatmul.f32.gmra.mxu0 %v730
    %v770 = vpop.f32.mrf.mxu0
    %v771 = vadd.f32 0.0, %v770
    %772 = vmatmul.f32.gmra.mxu0 %v733
    %v773 = vpop.f32.mrf.mxu0
    %v774 = vadd.f32 0.0, %v773
    %775 = vdwg.mxu0
    %v776 = vmul.f32 %v130, %v753
    %v777 = vmul.f32 %v130, %v756
    %v778 = vmul.f32 %v133, %v759
    %v779 = vmul.f32 %v133, %v762
    %v780 = vadd.f32 %v776, %v778
    %v781 = vadd.f32 %v777, %v779
    %v782 = vmul.f32 %v136, %v765
    %v783 = vmul.f32 %v136, %v768
    %v784 = vadd.f32 %v780, %v782
    %v785 = vadd.f32 %v781, %v783
    %v786 = vmul.f32 %v139, %v771
    %v787 = vmul.f32 %v139, %v774
    %v788 = vadd.f32 %v784, %v786
    %v789 = vadd.f32 %v785, %v787
    %v790 = vld [vmem:[%s10] sm:$0xff]
    %v791 = vld [vmem:[%s10 + $0x8] sm:$0xff]
    %v792 = vld [vmem:[%s10 + $0x10] sm:$0xff]
    %v793 = vld [vmem:[%s10 + $0x18] sm:$0xff]
    %v794 = vld [vmem:[%s11] sm:$0x1]
    %v796 = vperm.slane %v794, 0
    %v799 = vsel %vm331, %v788, 0
    %v802 = vsel %vm331, %v789, 0
    %804 = vmatpush.msra.mxu0 0.0
    %805 = vmatpush.msra.mxu0 0.0
    %806 = vmatpush.msra.mxu0 0.0
    %807 = vmatpush.msra.mxu0 0.0
    %808 = vmatpush.msra.mxu0 0.0
    %809 = vmatpush.msra.mxu0 0.0
    %810 = vmatpush.msra.mxu0 0.0
    %811 = vmatpush.msra.mxu0 0.0
    %812 = vmatpush.msra.mxu0 0.0
    %813 = vmatpush.msra.mxu0 0.0
    %814 = vmatpush.msra.mxu0 0.0
    %815 = vmatpush.msra.mxu0 0.0
    %816 = vmatpush.msra.mxu0 %v793
    %817 = vmatpush.msra.mxu0 %v792
    %818 = vmatpush.msra.mxu0 %v791
    %819 = vmatpush.msra.mxu0 %v790
    %820 = vmatmul.f32.gmra.mxu0 %v799
    %v821 = vpop.f32.mrf.mxu0
    %v822 = vadd.f32 %v796, %v821
    %823 = vmatmul.f32.gmra.mxu0 %v802
    %v824 = vpop.f32.mrf.mxu0
    %v825 = vadd.f32 %v796, %v824
    %826 = vdwg.mxu0
    %v827 = vadd.f32 %v391, %v822
    %v828 = vadd.f32 %v392, %v825
    %v829 = vld [vmem:[%s12] sm:$0x1]
    %v830 = vld [vmem:[%s13] sm:$0x1]
    %v831 = vsel %vm331, %v827, 0.0
    %832 = vadd.xlane.f32.xlu0 %v831
    %v833 = vpop.xlane.xlu0 %832
    %v834 = vsel %vm331, %v828, 0.0
    %835 = vadd.xlane.f32.xlu0 %v834
    %v836 = vpop.xlane.xlu0 %835
    %v837 = vmul.f32 %v833, %v344
    %v838 = vmul.f32 %v836, %v344
    %v839 = vsub.f32 %v827, %v837
    %v840 = vsub.f32 %v828, %v838
    %v841 = vmul.f32 %v839, %v839
    %v842 = vmul.f32 %v840, %v840
    %v843 = vsel %vm331, %v841, 0.0
    %844 = vadd.xlane.f32.xlu0 %v843
    %v845 = vpop.xlane.xlu0 %844
    %v846 = vsel %vm331, %v842, 0.0
    %847 = vadd.xlane.f32.xlu0 %v846
    %v848 = vpop.xlane.xlu0 %847
    %v849 = vmul.f32 %v845, %v344
    %v850 = vmul.f32 %v848, %v344
    %v851 = vadd.f32 %v849, 1e-05
    %v852 = vadd.f32 %v850, 1e-05
    %v853 = vrsqrt.pop %v851
    %v854 = vmul.f32 %v853, %v851
    %v855 = vmul.f32 %v854, %v853
    %v856 = vmul.f32 0.5, %v855
    %v857 = vsub.f32 1.5, %v856
    %v858 = vmul.f32 %v853, %v857
    %vm859 = vweird.f32 %v851
    %vm860 = vweird.f32 %v853
    %vm861 = vmor %vm859, %vm860
    %v862 = vsel %vm861, %v853, %v858
    %v863 = vrsqrt.pop %v852
    %v864 = vmul.f32 %v863, %v852
    %v865 = vmul.f32 %v864, %v863
    %v866 = vmul.f32 0.5, %v865
    %v867 = vsub.f32 1.5, %v866
    %v868 = vmul.f32 %v863, %v867
    %vm869 = vweird.f32 %v852
    %vm870 = vweird.f32 %v863
    %vm871 = vmor %vm869, %vm870
    %v872 = vsel %vm871, %v863, %v868
    %v873 = vmul.f32 %v839, %v862
    %v874 = vmul.f32 %v840, %v872
    %v876 = vperm.slane %v829, 0
    %v878 = vmul.f32 %v873, %v876
    %v879 = vmul.f32 %v874, %v876
    %v881 = vperm.slane %v830, 0
    %v883 = vadd.f32 %v878, %v881
    %v884 = vadd.f32 %v879, %v881
    %v885 = vld [vmem:[%s14] sm:$0xff]
    %v886 = vld [vmem:[%s14 + $0x8] sm:$0xff]
    %v887 = vld [vmem:[%s14 + $0x10] sm:$0xff]
    %v888 = vld [vmem:[%s14 + $0x18] sm:$0xff]
    %v889 = vld [vmem:[%s15] sm:$0x1]
    %v891 = vperm.slane %v889, 0
    %v894 = vsel %vm331, %v883, 0
    %v897 = vsel %vm331, %v884, 0
    %899 = vmatpush.msra.mxu0 0.0
    %900 = vmatpush.msra.mxu0 0.0
    %901 = vmatpush.msra.mxu0 0.0
    %902 = vmatpush.msra.mxu0 0.0
    %903 = vmatpush.msra.mxu0 0.0
    %904 = vmatpush.msra.mxu0 0.0
    %905 = vmatpush.msra.mxu0 0.0
    %906 = vmatpush.msra.mxu0 0.0
    %907 = vmatpush.msra.mxu0 0.0
    %908 = vmatpush.msra.mxu0 0.0
    %909 = vmatpush.msra.mxu0 0.0
    %910 = vmatpush.msra.mxu0 0.0
    %911 = vmatpush.msra.mxu0 %v888
    %912 = vmatpush.msra.mxu0 %v887
    %913 = vmatpush.msra.mxu0 %v886
    %914 = vmatpush.msra.mxu0 %v885
    %915 = vmatmul.f32.gmra.mxu0 %v894
    %v916 = vpop.f32.mrf.mxu0
    %v917 = vadd.f32 %v891, %v916
    %918 = vmatmul.f32.gmra.mxu0 %v897
    %v919 = vpop.f32.mrf.mxu0
    %v920 = vadd.f32 %v891, %v919
    %921 = vdwg.mxu0
    %v922 = vmul.f32 %v917, 0.5
    %v923 = vmul.f32 %v920, 0.5
    %v924 = vmul.f32 %v917, 0.044715
    %v925 = vmul.f32 %v920, 0.044715
    %v926 = vmul.f32 %v924, %v917
    %v927 = vmul.f32 %v925, %v920
    %v928 = vmul.f32 %v926, %v917
    %v929 = vmul.f32 %v927, %v920
    %v930 = vadd.f32 %v917, %v928
    %v931 = vadd.f32 %v920, %v929
    %v932 = vmul.f32 %v930, 0.7978846
    %v933 = vmul.f32 %v931, 0.7978846
    %v934 = vtanh.pop %v932
    %v935 = vtanh.pop %v933
    %v936 = vadd.f32 %v934, 1.0
    %v937 = vadd.f32 %v935, 1.0
    %v938 = vmul.f32 %v922, %v936
    %v939 = vmul.f32 %v923, %v937
    %v940 = vld [vmem:[%s16] sm:$0xff]
    %v941 = vld [vmem:[%s16 + $0x8] sm:$0xff]
    %v942 = vld [vmem:[%s16 + $0x10] sm:$0xff]
    %v943 = vld [vmem:[%s16 + $0x18] sm:$0xff]
    %v944 = vld [vmem:[%s16 + $0x20] sm:$0xff]
    %v945 = vld [vmem:[%s16 + $0x28] sm:$0xff]
    %v946 = vld [vmem:[%s16 + $0x30] sm:$0xff]
    %v947 = vld [vmem:[%s16 + $0x38] sm:$0xff]
    %v948 = vld [vmem:[%s17] sm:$0x1]
    %v950 = vperm.slane %v948, 0
    %vm952 = vcmask 523264
    %v954 = vsel %vm952, %v938, 0
    %v957 = vsel %vm952, %v939, 0
    %959 = vmatpush.msra.mxu0 0.0
    %960 = vmatpush.msra.mxu0 0.0
    %961 = vmatpush.msra.mxu0 0.0
    %962 = vmatpush.msra.mxu0 0.0
    %963 = vmatpush.msra.mxu0 0.0
    %964 = vmatpush.msra.mxu0 0.0
    %965 = vmatpush.msra.mxu0 0.0
    %966 = vmatpush.msra.mxu0 0.0
    %967 = vmatpush.msra.mxu0 %v947
    %968 = vmatpush.msra.mxu0 %v946
    %969 = vmatpush.msra.mxu0 %v945
    %970 = vmatpush.msra.mxu0 %v944
    %971 = vmatpush.msra.mxu0 %v943
    %972 = vmatpush.msra.mxu0 %v942
    %973 = vmatpush.msra.mxu0 %v941
    %974 = vmatpush.msra.mxu0 %v940
    %975 = vmatmul.f32.gmra.mxu0 %v954
    %v976 = vpop.f32.mrf.mxu0
    %v977 = vadd.f32 %v950, %v976
    %978 = vmatmul.f32.gmra.mxu0 %v957
    %v979 = vpop.f32.mrf.mxu0
    %v980 = vadd.f32 %v950, %v979
    %981 = vdwg.mxu0
    %v982 = vadd.f32 %v883, %v977
    %v983 = vadd.f32 %v884, %v980
    %v984 = vld [vmem:[%s18] sm:$0x1]
    %v985 = vld [vmem:[%s19] sm:$0x1]
    %v986 = vsel %vm331, %v982, 0.0
    %987 = vadd.xlane.f32.xlu0 %v986
    %v988 = vpop.xlane.xlu0 %987
    %v989 = vsel %vm331, %v983, 0.0
    %990 = vadd.xlane.f32.xlu0 %v989
    %v991 = vpop.xlane.xlu0 %990
    %v992 = vmul.f32 %v988, %v344
    %v993 = vmul.f32 %v991, %v344
    %v994 = vsub.f32 %v982, %v992
    %v995 = vsub.f32 %v983, %v993
    %v996 = vmul.f32 %v994, %v994
    %v997 = vmul.f32 %v995, %v995
    %v998 = vsel %vm331, %v996, 0.0
    %999 = vadd.xlane.f32.xlu0 %v998
    %v1000 = vpop.xlane.xlu0 %999
    %v1001 = vsel %vm331, %v997, 0.0
    %1002 = vadd.xlane.f32.xlu0 %v1001
    %v1003 = vpop.xlane.xlu0 %1002
    %v1004 = vmul.f32 %v1000, %v344
    %v1005 = vmul.f32 %v1003, %v344
    %v1006 = vadd.f32 %v1004, 1e-05
    %v1007 = vadd.f32 %v1005, 1e-05
    %v1008 = vrsqrt.pop %v1006
    %v1009 = vmul.f32 %v1008, %v1006
    %v1010 = vmul.f32 %v1009, %v1008
    %v1011 = vmul.f32 0.5, %v1010
    %v1012 = vsub.f32 1.5, %v1011
    %v1013 = vmul.f32 %v1008, %v1012
    %vm1014 = vweird.f32 %v1006
    %vm1015 = vweird.f32 %v1008
    %vm1016 = vmor %vm1014, %vm1015
    %v1017 = vsel %vm1016, %v1008, %v1013
    %v1018 = vrsqrt.pop %v1007
    %v1019 = vmul.f32 %v1018, %v1007
    %v1020 = vmul.f32 %v1019, %v1018
    %v1021 = vmul.f32 0.5, %v1020
    %v1022 = vsub.f32 1.5, %v1021
    %v1023 = vmul.f32 %v1018, %v1022
    %vm1024 = vweird.f32 %v1007
    %vm1025 = vweird.f32 %v1018
    %vm1026 = vmor %vm1024, %vm1025
    %v1027 = vsel %vm1026, %v1018, %v1023
    %v1028 = vmul.f32 %v994, %v1017
    %v1029 = vmul.f32 %v995, %v1027
    %v1031 = vperm.slane %v984, 0
    %v1033 = vmul.f32 %v1028, %v1031
    %v1034 = vmul.f32 %v1029, %v1031
    %v1036 = vperm.slane %v985, 0
    %v1038 = vadd.f32 %v1033, %v1036
    %v1039 = vadd.f32 %v1034, %v1036
    %s1040 = scalar_lea.vmem %s8, 32
    %v1041 = vld [vmem:[%s1040] sm:$0xff]
    %v1042 = vld [vmem:[%s1040 + $0x8] sm:$0xff]
    %v1043 = vld [vmem:[%s1040 + $0x10] sm:$0xff]
    %v1044 = vld [vmem:[%s1040 + $0x18] sm:$0xff]
    %s1045 = scalar_lea.vmem %s9, 1
    %v1046 = vld [vmem:[%s1045] sm:$0x1]
    %v1048 = vperm.slane %v1046, 0
    %v1051 = vsel %vm331, %v1038, 0
    %v1054 = vsel %vm331, %v1039, 0
    %1056 = vmatpush.msra.mxu0 0.0
    %1057 = vmatpush.msra.mxu0 0.0
    %1058 = vmatpush.msra.mxu0 0.0
    %1059 = vmatpush.msra.mxu0 0.0
    %1060 = vmatpush.msra.mxu0 0.0
    %1061 = vmatpush.msra.mxu0 0.0
    %1062 = vmatpush.msra.mxu0 0.0
    %1063 = vmatpush.msra.mxu0 0.0
    %1064 = vmatpush.msra.mxu0 0.0
    %1065 = vmatpush.msra.mxu0 0.0
    %1066 = vmatpush.msra.mxu0 0.0
    %1067 = vmatpush.msra.mxu0 0.0
    %1068 = vmatpush.msra.mxu0 %v1044
    %1069 = vmatpush.msra.mxu0 %v1043
    %1070 = vmatpush.msra.mxu0 %v1042
    %1071 = vmatpush.msra.mxu0 %v1041
    %1072 = vmatmul.f32.gmra.mxu0 %v1051
    %v1073 = vpop.f32.mrf.mxu0
    %v1074 = vadd.f32 %v1048, %v1073
    %1075 = vmatmul.f32.gmra.mxu0 %v1054
    %v1076 = vpop.f32.mrf.mxu0
    %v1077 = vadd.f32 %v1048, %v1076
    %1078 = vdwg.mxu0
    %v1079 = vmul.f32 %v1074, %v120
    %v1080 = vmul.f32 %v1077, %v121
    %v1081 = vmul.f32 %v1074, %v122
    %v1082 = vmul.f32 %v1077, %v123
    %v1083 = vmul.f32 %v1074, %v124
    %v1084 = vmul.f32 %v1077, %v125
    %v1085 = vmul.f32 %v1074, %v126
    %v1086 = vmul.f32 %v1077, %v127
    %1089 = vrot.lane.b32.xlu0 %v1074, 96
    %v1090 = vpop.permute.xlu0 %1089
    %1091 = vrot.lane.b32.xlu0 %v1077, 96
    %v1092 = vpop.permute.xlu0 %1091
    %v1094 = vsel %vm331, %v1079, 0
    %v1097 = vsel %vm331, %v1080, 0
    %v1100 = vsel %vm331, %v1081, 0
    %v1103 = vsel %vm331, %v1082, 0
    %v1106 = vsel %vm331, %v1083, 0
    %v1109 = vsel %vm331, %v1084, 0
    %v1112 = vsel %vm331, %v1085, 0
    %v1115 = vsel %vm331, %v1086, 0
    %v1117 = vsel %vm331, %v1090, 0
    %v1119 = vsel %vm331, %v1092, 0
    %1121 = vmatpush.xpose.msra.mxu0 0.0
    %1122 = vmatpush.xpose.msra.mxu0 0.0
    %1123 = vmatpush.xpose.msra.mxu0 0.0
    %1124 = vmatpush.xpose.msra.mxu0 0.0
    %1125 = vmatpush.xpose.msra.mxu0 0.0
    %1126 = vmatpush.xpose.msra.mxu0 0.0
    %1127 = vmatpush.xpose.msra.mxu0 0.0
    %1128 = vmatpush.xpose.msra.mxu0 0.0
    %1129 = vmatpush.xpose.msra.mxu0 0.0
    %1130 = vmatpush.xpose.msra.mxu0 0.0
    %1131 = vmatpush.xpose.msra.mxu0 0.0
    %1132 = vmatpush.xpose.msra.mxu0 0.0
    %1133 = vmatpush.xpose.msra.mxu0 0.0
    %1134 = vmatpush.xpose.msra.mxu0 0.0
    %1135 = vmatpush.xpose.msra.mxu0 %v1119
    %1136 = vmatpush.xpose.msra.mxu0 %v1117
    %1137 = vmatmul.f32.gmra.mxu0 %v1094
    %v1138 = vpop.f32.mrf.mxu0
    %v1139 = vadd.f32 %v177, %v1138
    %1140 = vmatmul.f32.gmra.mxu0 %v1097
    %v1141 = vpop.f32.mrf.mxu0
    %v1142 = vadd.f32 %v178, %v1141
    %1143 = vmatmul.f32.gmra.mxu0 %v1100
    %v1144 = vpop.f32.mrf.mxu0
    %v1145 = vadd.f32 %v179, %v1144
    %1146 = vmatmul.f32.gmra.mxu0 %v1103
    %v1147 = vpop.f32.mrf.mxu0
    %v1148 = vadd.f32 %v180, %v1147
    %1149 = vmatmul.f32.gmra.mxu0 %v1106
    %v1150 = vpop.f32.mrf.mxu0
    %v1151 = vadd.f32 %v181, %v1150
    %1152 = vmatmul.f32.gmra.mxu0 %v1109
    %v1153 = vpop.f32.mrf.mxu0
    %v1154 = vadd.f32 %v182, %v1153
    %1155 = vmatmul.f32.gmra.mxu0 %v1112
    %v1156 = vpop.f32.mrf.mxu0
    %v1157 = vadd.f32 %v183, %v1156
    %1158 = vmatmul.f32.gmra.mxu0 %v1115
    %v1159 = vpop.f32.mrf.mxu0
    %v1160 = vadd.f32 %v184, %v1159
    %1161 = vdwg.mxu0
    %v1162 = vsel %vm225, %v1139, -inf
    %1163 = vmax.xlane.f32.xlu0 %v1162
    %v1164 = vpop.xlane.xlu0 %1163
    %v1165 = vsel %vm225, %v1142, -inf
    %1166 = vmax.xlane.f32.xlu0 %v1165
    %v1167 = vpop.xlane.xlu0 %1166
    %v1168 = vsel %vm225, %v1145, -inf
    %1169 = vmax.xlane.f32.xlu0 %v1168
    %v1170 = vpop.xlane.xlu0 %1169
    %v1171 = vsel %vm225, %v1148, -inf
    %1172 = vmax.xlane.f32.xlu0 %v1171
    %v1173 = vpop.xlane.xlu0 %1172
    %v1174 = vsel %vm225, %v1151, -inf
    %1175 = vmax.xlane.f32.xlu0 %v1174
    %v1176 = vpop.xlane.xlu0 %1175
    %v1177 = vsel %vm225, %v1154, -inf
    %1178 = vmax.xlane.f32.xlu0 %v1177
    %v1179 = vpop.xlane.xlu0 %1178
    %v1180 = vsel %vm225, %v1157, -inf
    %1181 = vmax.xlane.f32.xlu0 %v1180
    %v1182 = vpop.xlane.xlu0 %1181
    %v1183 = vsel %vm225, %v1160, -inf
    %1184 = vmax.xlane.f32.xlu0 %v1183
    %v1185 = vpop.xlane.xlu0 %1184
    %v1186 = vsub.f32 %v1139, %v1164
    %v1187 = vsub.f32 %v1142, %v1167
    %v1188 = vsub.f32 %v1145, %v1170
    %v1189 = vsub.f32 %v1148, %v1173
    %v1190 = vsub.f32 %v1151, %v1176
    %v1191 = vsub.f32 %v1154, %v1179
    %v1192 = vsub.f32 %v1157, %v1182
    %v1193 = vsub.f32 %v1160, %v1185
    %v1194 = vmul.f32 %v1186, 1.442695
    %v1195 = vpow.pop %v1194
    %v1196 = vmul.f32 %v1187, 1.442695
    %v1197 = vpow.pop %v1196
    %v1198 = vmul.f32 %v1188, 1.442695
    %v1199 = vpow.pop %v1198
    %v1200 = vmul.f32 %v1189, 1.442695
    %v1201 = vpow.pop %v1200
    %v1202 = vmul.f32 %v1190, 1.442695
    %v1203 = vpow.pop %v1202
    %v1204 = vmul.f32 %v1191, 1.442695
    %v1205 = vpow.pop %v1204
    %v1206 = vmul.f32 %v1192, 1.442695
    %v1207 = vpow.pop %v1206
    %v1208 = vmul.f32 %v1193, 1.442695
    %v1209 = vpow.pop %v1208
    %v1210 = vsel %vm225, %v1195, 0.0
    %1211 = vadd.xlane.f32.xlu0 %v1210
    %v1212 = vpop.xlane.xlu0 %1211
    %v1213 = vsel %vm225, %v1197, 0.0
    %1214 = vadd.xlane.f32.xlu0 %v1213
    %v1215 = vpop.xlane.xlu0 %1214
    %v1216 = vsel %vm225, %v1199, 0.0
    %1217 = vadd.xlane.f32.xlu0 %v1216
    %v1218 = vpop.xlane.xlu0 %1217
    %v1219 = vsel %vm225, %v1201, 0.0
    %1220 = vadd.xlane.f32.xlu0 %v1219
    %v1221 = vpop.xlane.xlu0 %1220
    %v1222 = vsel %vm225, %v1203, 0.0
    %1223 = vadd.xlane.f32.xlu0 %v1222
    %v1224 = vpop.xlane.xlu0 %1223
    %v1225 = vsel %vm225, %v1205, 0.0
    %1226 = vadd.xlane.f32.xlu0 %v1225
    %v1227 = vpop.xlane.xlu0 %1226
    %v1228 = vsel %vm225, %v1207, 0.0
    %1229 = vadd.xlane.f32.xlu0 %v1228
    %v1230 = vpop.xlane.xlu0 %1229
    %v1231 = vsel %vm225, %v1209, 0.0
    %1232 = vadd.xlane.f32.xlu0 %v1231
    %v1233 = vpop.xlane.xlu0 %1232
    %v1234 = vrcp.pop %v1212
    %v1235 = vmul.f32 %v1212, %v1234
    %v1236 = vsub.f32 1.0, %v1235
    %v1237 = vmul.f32 %v1234, %v1236
    %v1238 = vadd.f32 %v1234, %v1237
    %vm1239 = vweird.f32 %v1212
    %vm1240 = vweird.f32 %v1234
    %vm1241 = vmor %vm1239, %vm1240
    %v1242 = vsel %vm1241, %v1234, %v1238
    %v1243 = vand.u32 2147483647, %v1212
    %vm1244 = vcmp.eq.f32.partialorder %v1243, 8.507059e+37
    %v1245 = vand.u32 %v1212, 2147483648
    %v1246 = vor.u32 1.1754944e-38, %v1245
    %v1247 = vsel %vm1244, %v1246, %v1242
    %v1248 = vmul.f32 %v1195, %v1247
    %v1249 = vrcp.pop %v1215
    %v1250 = vmul.f32 %v1215, %v1249
    %v1251 = vsub.f32 1.0, %v1250
    %v1252 = vmul.f32 %v1249, %v1251
    %v1253 = vadd.f32 %v1249, %v1252
    %vm1254 = vweird.f32 %v1215
    %vm1255 = vweird.f32 %v1249
    %vm1256 = vmor %vm1254, %vm1255
    %v1257 = vsel %vm1256, %v1249, %v1253
    %v1258 = vand.u32 2147483647, %v1215
    %vm1259 = vcmp.eq.f32.partialorder %v1258, 8.507059e+37
    %v1260 = vand.u32 %v1215, 2147483648
    %v1261 = vor.u32 1.1754944e-38, %v1260
    %v1262 = vsel %vm1259, %v1261, %v1257
    %v1263 = vmul.f32 %v1197, %v1262
    %v1264 = vrcp.pop %v1218
    %v1265 = vmul.f32 %v1218, %v1264
    %v1266 = vsub.f32 1.0, %v1265
    %v1267 = vmul.f32 %v1264, %v1266
    %v1268 = vadd.f32 %v1264, %v1267
    %vm1269 = vweird.f32 %v1218
    %vm1270 = vweird.f32 %v1264
    %vm1271 = vmor %vm1269, %vm1270
    %v1272 = vsel %vm1271, %v1264, %v1268
    %v1273 = vand.u32 2147483647, %v1218
    %vm1274 = vcmp.eq.f32.partialorder %v1273, 8.507059e+37
    %v1275 = vand.u32 %v1218, 2147483648
    %v1276 = vor.u32 1.1754944e-38, %v1275
    %v1277 = vsel %vm1274, %v1276, %v1272
    %v1278 = vmul.f32 %v1199, %v1277
    %v1279 = vrcp.pop %v1221
    %v1280 = vmul.f32 %v1221, %v1279
    %v1281 = vsub.f32 1.0, %v1280
    %v1282 = vmul.f32 %v1279, %v1281
    %v1283 = vadd.f32 %v1279, %v1282
    %vm1284 = vweird.f32 %v1221
    %vm1285 = vweird.f32 %v1279
    %vm1286 = vmor %vm1284, %vm1285
    %v1287 = vsel %vm1286, %v1279, %v1283
    %v1288 = vand.u32 2147483647, %v1221
    %vm1289 = vcmp.eq.f32.partialorder %v1288, 8.507059e+37
    %v1290 = vand.u32 %v1221, 2147483648
    %v1291 = vor.u32 1.1754944e-38, %v1290
    %v1292 = vsel %vm1289, %v1291, %v1287
    %v1293 = vmul.f32 %v1201, %v1292
    %v1294 = vrcp.pop %v1224
    %v1295 = vmul.f32 %v1224, %v1294
    %v1296 = vsub.f32 1.0, %v1295
    %v1297 = vmul.f32 %v1294, %v1296
    %v1298 = vadd.f32 %v1294, %v1297
    %vm1299 = vweird.f32 %v1224
    %vm1300 = vweird.f32 %v1294
    %vm1301 = vmor %vm1299, %vm1300
    %v1302 = vsel %vm1301, %v1294, %v1298
    %v1303 = vand.u32 2147483647, %v1224
    %vm1304 = vcmp.eq.f32.partialorder %v1303, 8.507059e+37
    %v1305 = vand.u32 %v1224, 2147483648
    %v1306 = vor.u32 1.1754944e-38, %v1305
    %v1307 = vsel %vm1304, %v1306, %v1302
    %v1308 = vmul.f32 %v1203, %v1307
    %v1309 = vrcp.pop %v1227
    %v1310 = vmul.f32 %v1227, %v1309
    %v1311 = vsub.f32 1.0, %v1310
    %v1312 = vmul.f32 %v1309, %v1311
    %v1313 = vadd.f32 %v1309, %v1312
    %vm1314 = vweird.f32 %v1227
    %vm1315 = vweird.f32 %v1309
    %vm1316 = vmor %vm1314, %vm1315
    %v1317 = vsel %vm1316, %v1309, %v1313
    %v1318 = vand.u32 2147483647, %v1227
    %vm1319 = vcmp.eq.f32.partialorder %v1318, 8.507059e+37
    %v1320 = vand.u32 %v1227, 2147483648
    %v1321 = vor.u32 1.1754944e-38, %v1320
    %v1322 = vsel %vm1319, %v1321, %v1317
    %v1323 = vmul.f32 %v1205, %v1322
    %v1324 = vrcp.pop %v1230
    %v1325 = vmul.f32 %v1230, %v1324
    %v1326 = vsub.f32 1.0, %v1325
    %v1327 = vmul.f32 %v1324, %v1326
    %v1328 = vadd.f32 %v1324, %v1327
    %vm1329 = vweird.f32 %v1230
    %vm1330 = vweird.f32 %v1324
    %vm1331 = vmor %vm1329, %vm1330
    %v1332 = vsel %vm1331, %v1324, %v1328
    %v1333 = vand.u32 2147483647, %v1230
    %vm1334 = vcmp.eq.f32.partialorder %v1333, 8.507059e+37
    %v1335 = vand.u32 %v1230, 2147483648
    %v1336 = vor.u32 1.1754944e-38, %v1335
    %v1337 = vsel %vm1334, %v1336, %v1332
    %v1338 = vmul.f32 %v1207, %v1337
    %v1339 = vrcp.pop %v1233
    %v1340 = vmul.f32 %v1233, %v1339
    %v1341 = vsub.f32 1.0, %v1340
    %v1342 = vmul.f32 %v1339, %v1341
    %v1343 = vadd.f32 %v1339, %v1342
    %vm1344 = vweird.f32 %v1233
    %vm1345 = vweird.f32 %v1339
    %vm1346 = vmor %vm1344, %vm1345
    %v1347 = vsel %vm1346, %v1339, %v1343
    %v1348 = vand.u32 2147483647, %v1233
    %vm1349 = vcmp.eq.f32.partialorder %v1348, 8.507059e+37
    %v1350 = vand.u32 %v1233, 2147483648
    %v1351 = vor.u32 1.1754944e-38, %v1350
    %v1352 = vsel %vm1349, %v1351, %v1347
    %v1353 = vmul.f32 %v1209, %v1352
    %1354 = vrot.lane.b32.xlu0 %v1074, 64
    %v1355 = vpop.permute.xlu0 %1354
    %1356 = vrot.lane.b32.xlu0 %v1077, 64
    %v1357 = vpop.permute.xlu0 %1356
    %v1361 = vsel %vm225, %v1248, 0
    %v1364 = vsel %vm225, %v1263, 0
    %v1367 = vsel %vm225, %v1278, 0
    %v1370 = vsel %vm225, %v1293, 0
    %v1373 = vsel %vm225, %v1308, 0
    %v1376 = vsel %vm225, %v1323, 0
    %v1379 = vsel %vm225, %v1338, 0
    %v1382 = vsel %vm225, %v1353, 0
    %1384 = vmatpush.msra.mxu0 0.0
    %1385 = vmatpush.msra.mxu0 0.0
    %1386 = vmatpush.msra.mxu0 0.0
    %1387 = vmatpush.msra.mxu0 0.0
    %1388 = vmatpush.msra.mxu0 0.0
    %1389 = vmatpush.msra.mxu0 0.0
    %1390 = vmatpush.msra.mxu0 0.0
    %1391 = vmatpush.msra.mxu0 0.0
    %1392 = vmatpush.msra.mxu0 0.0
    %1393 = vmatpush.msra.mxu0 0.0
    %1394 = vmatpush.msra.mxu0 0.0
    %1395 = vmatpush.msra.mxu0 0.0
    %1396 = vmatpush.msra.mxu0 0.0
    %1397 = vmatpush.msra.mxu0 0.0
    %1398 = vmatpush.msra.mxu0 %v1357
    %1399 = vmatpush.msra.mxu0 %v1355
    %1400 = vmatmul.f32.gmra.mxu0 %v1361
    %v1401 = vpop.f32.mrf.mxu0
    %v1402 = vadd.f32 0.0, %v1401
    %1403 = vmatmul.f32.gmra.mxu0 %v1364
    %v1404 = vpop.f32.mrf.mxu0
    %v1405 = vadd.f32 0.0, %v1404
    %1406 = vmatmul.f32.gmra.mxu0 %v1367
    %v1407 = vpop.f32.mrf.mxu0
    %v1408 = vadd.f32 0.0, %v1407
    %1409 = vmatmul.f32.gmra.mxu0 %v1370
    %v1410 = vpop.f32.mrf.mxu0
    %v1411 = vadd.f32 0.0, %v1410
    %1412 = vmatmul.f32.gmra.mxu0 %v1373
    %v1413 = vpop.f32.mrf.mxu0
    %v1414 = vadd.f32 0.0, %v1413
    %1415 = vmatmul.f32.gmra.mxu0 %v1376
    %v1416 = vpop.f32.mrf.mxu0
    %v1417 = vadd.f32 0.0, %v1416
    %1418 = vmatmul.f32.gmra.mxu0 %v1379
    %v1419 = vpop.f32.mrf.mxu0
    %v1420 = vadd.f32 0.0, %v1419
    %1421 = vmatmul.f32.gmra.mxu0 %v1382
    %v1422 = vpop.f32.mrf.mxu0
    %v1423 = vadd.f32 0.0, %v1422
    %1424 = vdwg.mxu0
    %v1425 = vmul.f32 %v130, %v1402
    %v1426 = vmul.f32 %v130, %v1405
    %v1427 = vmul.f32 %v133, %v1408
    %v1428 = vmul.f32 %v133, %v1411
    %v1429 = vadd.f32 %v1425, %v1427
    %v1430 = vadd.f32 %v1426, %v1428
    %v1431 = vmul.f32 %v136, %v1414
    %v1432 = vmul.f32 %v136, %v1417
    %v1433 = vadd.f32 %v1429, %v1431
    %v1434 = vadd.f32 %v1430, %v1432
    %v1435 = vmul.f32 %v139, %v1420
    %v1436 = vmul.f32 %v139, %v1423
    %v1437 = vadd.f32 %v1433, %v1435
    %v1438 = vadd.f32 %v1434, %v1436
    %s1439 = scalar_lea.vmem %s10, 32
    %v1440 = vld [vmem:[%s1439] sm:$0xff]
    %v1441 = vld [vmem:[%s1439 + $0x8] sm:$0xff]
    %v1442 = vld [vmem:[%s1439 + $0x10] sm:$0xff]
    %v1443 = vld [vmem:[%s1439 + $0x18] sm:$0xff]
    %s1444 = scalar_lea.vmem %s11, 1
    %v1445 = vld [vmem:[%s1444] sm:$0x1]
    %v1447 = vperm.slane %v1445, 0
    %v1450 = vsel %vm331, %v1437, 0
    %v1453 = vsel %vm331, %v1438, 0
    %1455 = vmatpush.msra.mxu0 0.0
    %1456 = vmatpush.msra.mxu0 0.0
    %1457 = vmatpush.msra.mxu0 0.0
    %1458 = vmatpush.msra.mxu0 0.0
    %1459 = vmatpush.msra.mxu0 0.0
    %1460 = vmatpush.msra.mxu0 0.0
    %1461 = vmatpush.msra.mxu0 0.0
    %1462 = vmatpush.msra.mxu0 0.0
    %1463 = vmatpush.msra.mxu0 0.0
    %1464 = vmatpush.msra.mxu0 0.0
    %1465 = vmatpush.msra.mxu0 0.0
    %1466 = vmatpush.msra.mxu0 0.0
    %1467 = vmatpush.msra.mxu0 %v1443
    %1468 = vmatpush.msra.mxu0 %v1442
    %1469 = vmatpush.msra.mxu0 %v1441
    %1470 = vmatpush.msra.mxu0 %v1440
    %1471 = vmatmul.f32.gmra.mxu0 %v1450
    %v1472 = vpop.f32.mrf.mxu0
    %v1473 = vadd.f32 %v1447, %v1472
    %1474 = vmatmul.f32.gmra.mxu0 %v1453
    %v1475 = vpop.f32.mrf.mxu0
    %v1476 = vadd.f32 %v1447, %v1475
    %1477 = vdwg.mxu0
    %v1478 = vadd.f32 %v1038, %v1473
    %v1479 = vadd.f32 %v1039, %v1476
    %s1480 = scalar_lea.vmem %s12, 1
    %v1481 = vld [vmem:[%s1480] sm:$0x1]
    %s1482 = scalar_lea.vmem %s13, 1
    %v1483 = vld [vmem:[%s1482] sm:$0x1]
    %v1484 = vsel %vm331, %v1478, 0.0
    %1485 = vadd.xlane.f32.xlu0 %v1484
    %v1486 = vpop.xlane.xlu0 %1485
    %v1487 = vsel %vm331, %v1479, 0.0
    %1488 = vadd.xlane.f32.xlu0 %v1487
    %v1489 = vpop.xlane.xlu0 %1488
    %v1490 = vmul.f32 %v1486, %v344
    %v1491 = vmul.f32 %v1489, %v344
    %v1492 = vsub.f32 %v1478, %v1490
    %v1493 = vsub.f32 %v1479, %v1491
    %v1494 = vmul.f32 %v1492, %v1492
    %v1495 = vmul.f32 %v1493, %v1493
    %v1496 = vsel %vm331, %v1494, 0.0
    %1497 = vadd.xlane.f32.xlu0 %v1496
    %v1498 = vpop.xlane.xlu0 %1497
    %v1499 = vsel %vm331, %v1495, 0.0
    %1500 = vadd.xlane.f32.xlu0 %v1499
    %v1501 = vpop.xlane.xlu0 %1500
    %v1502 = vmul.f32 %v1498, %v344
    %v1503 = vmul.f32 %v1501, %v344
    %v1504 = vadd.f32 %v1502, 1e-05
    %v1505 = vadd.f32 %v1503, 1e-05
    %v1506 = vrsqrt.pop %v1504
    %v1507 = vmul.f32 %v1506, %v1504
    %v1508 = vmul.f32 %v1507, %v1506
    %v1509 = vmul.f32 0.5, %v1508
    %v1510 = vsub.f32 1.5, %v1509
    %v1511 = vmul.f32 %v1506, %v1510
    %vm1512 = vweird.f32 %v1504
    %vm1513 = vweird.f32 %v1506
    %vm1514 = vmor %vm1512, %vm1513
    %v1515 = vsel %vm1514, %v1506, %v1511
    %v1516 = vrsqrt.pop %v1505
    %v1517 = vmul.f32 %v1516, %v1505
    %v1518 = vmul.f32 %v1517, %v1516
    %v1519 = vmul.f32 0.5, %v1518
    %v1520 = vsub.f32 1.5, %v1519
    %v1521 = vmul.f32 %v1516, %v1520
    %vm1522 = vweird.f32 %v1505
    %vm1523 = vweird.f32 %v1516
    %vm1524 = vmor %vm1522, %vm1523
    %v1525 = vsel %vm1524, %v1516, %v1521
    %v1526 = vmul.f32 %v1492, %v1515
    %v1527 = vmul.f32 %v1493, %v1525
    %v1529 = vperm.slane %v1481, 0
    %v1531 = vmul.f32 %v1526, %v1529
    %v1532 = vmul.f32 %v1527, %v1529
    %v1534 = vperm.slane %v1483, 0
    %v1536 = vadd.f32 %v1531, %v1534
    %v1537 = vadd.f32 %v1532, %v1534
    %s1538 = scalar_lea.vmem %s14, 32
    %v1539 = vld [vmem:[%s1538] sm:$0xff]
    %v1540 = vld [vmem:[%s1538 + $0x8] sm:$0xff]
    %v1541 = vld [vmem:[%s1538 + $0x10] sm:$0xff]
    %v1542 = vld [vmem:[%s1538 + $0x18] sm:$0xff]
    %s1543 = scalar_lea.vmem %s15, 1
    %v1544 = vld [vmem:[%s1543] sm:$0x1]
    %v1546 = vperm.slane %v1544, 0
    %v1549 = vsel %vm331, %v1536, 0
    %v1552 = vsel %vm331, %v1537, 0
    %1554 = vmatpush.msra.mxu0 0.0
    %1555 = vmatpush.msra.mxu0 0.0
    %1556 = vmatpush.msra.mxu0 0.0
    %1557 = vmatpush.msra.mxu0 0.0
    %1558 = vmatpush.msra.mxu0 0.0
    %1559 = vmatpush.msra.mxu0 0.0
    %1560 = vmatpush.msra.mxu0 0.0
    %1561 = vmatpush.msra.mxu0 0.0
    %1562 = vmatpush.msra.mxu0 0.0
    %1563 = vmatpush.msra.mxu0 0.0
    %1564 = vmatpush.msra.mxu0 0.0
    %1565 = vmatpush.msra.mxu0 0.0
    %1566 = vmatpush.msra.mxu0 %v1542
    %1567 = vmatpush.msra.mxu0 %v1541
    %1568 = vmatpush.msra.mxu0 %v1540
    %1569 = vmatpush.msra.mxu0 %v1539
    %1570 = vmatmul.f32.gmra.mxu0 %v1549
    %v1571 = vpop.f32.mrf.mxu0
    %v1572 = vadd.f32 %v1546, %v1571
    %1573 = vmatmul.f32.gmra.mxu0 %v1552
    %v1574 = vpop.f32.mrf.mxu0
    %v1575 = vadd.f32 %v1546, %v1574
    %1576 = vdwg.mxu0
    %v1577 = vmul.f32 %v1572, 0.5
    %v1578 = vmul.f32 %v1575, 0.5
    %v1579 = vmul.f32 %v1572, 0.044715
    %v1580 = vmul.f32 %v1575, 0.044715
    %v1581 = vmul.f32 %v1579, %v1572
    %v1582 = vmul.f32 %v1580, %v1575
    %v1583 = vmul.f32 %v1581, %v1572
    %v1584 = vmul.f32 %v1582, %v1575
    %v1585 = vadd.f32 %v1572, %v1583
    %v1586 = vadd.f32 %v1575, %v1584
    %v1587 = vmul.f32 %v1585, 0.7978846
    %v1588 = vmul.f32 %v1586, 0.7978846
    %v1589 = vtanh.pop %v1587
    %v1590 = vtanh.pop %v1588
    %v1591 = vadd.f32 %v1589, 1.0
    %v1592 = vadd.f32 %v1590, 1.0
    %v1593 = vmul.f32 %v1577, %v1591
    %v1594 = vmul.f32 %v1578, %v1592
    %s1595 = scalar_lea.vmem %s16, 64
    %v1596 = vld [vmem:[%s1595] sm:$0xff]
    %v1597 = vld [vmem:[%s1595 + $0x8] sm:$0xff]
    %v1598 = vld [vmem:[%s1595 + $0x10] sm:$0xff]
    %v1599 = vld [vmem:[%s1595 + $0x18] sm:$0xff]
    %v1600 = vld [vmem:[%s1595 + $0x20] sm:$0xff]
    %v1601 = vld [vmem:[%s1595 + $0x28] sm:$0xff]
    %v1602 = vld [vmem:[%s1595 + $0x30] sm:$0xff]
    %v1603 = vld [vmem:[%s1595 + $0x38] sm:$0xff]
    %s1604 = scalar_lea.vmem %s17, 1
    %v1605 = vld [vmem:[%s1604] sm:$0x1]
    %v1607 = vperm.slane %v1605, 0
    %v1610 = vsel %vm952, %v1593, 0
    %v1613 = vsel %vm952, %v1594, 0
    %1615 = vmatpush.msra.mxu0 0.0
    %1616 = vmatpush.msra.mxu0 0.0
    %1617 = vmatpush.msra.mxu0 0.0
    %1618 = vmatpush.msra.mxu0 0.0
    %1619 = vmatpush.msra.mxu0 0.0
    %1620 = vmatpush.msra.mxu0 0.0
    %1621 = vmatpush.msra.mxu0 0.0
    %1622 = vmatpush.msra.mxu0 0.0
    %1623 = vmatpush.msra.mxu0 %v1603
    %1624 = vmatpush.msra.mxu0 %v1602
    %1625 = vmatpush.msra.mxu0 %v1601
    %1626 = vmatpush.msra.mxu0 %v1600
    %1627 = vmatpush.msra.mxu0 %v1599
    %1628 = vmatpush.msra.mxu0 %v1598
    %1629 = vmatpush.msra.mxu0 %v1597
    %1630 = vmatpush.msra.mxu0 %v1596
    %1631 = vmatmul.f32.gmra.mxu0 %v1610
    %v1632 = vpop.f32.mrf.mxu0
    %v1633 = vadd.f32 %v1607, %v1632
    %1634 = vmatmul.f32.gmra.mxu0 %v1613
    %v1635 = vpop.f32.mrf.mxu0
    %v1636 = vadd.f32 %v1607, %v1635
    %1637 = vdwg.mxu0
    %v1638 = vadd.f32 %v1536, %v1633
    %v1639 = vadd.f32 %v1537, %v1636
    %s1640 = scalar_lea.vmem %s18, 1
    %v1641 = vld [vmem:[%s1640] sm:$0x1]
    %s1642 = scalar_lea.vmem %s19, 1
    %v1643 = vld [vmem:[%s1642] sm:$0x1]
    %v1644 = vsel %vm331, %v1638, 0.0
    %1645 = vadd.xlane.f32.xlu0 %v1644
    %v1646 = vpop.xlane.xlu0 %1645
    %v1647 = vsel %vm331, %v1639, 0.0
    %1648 = vadd.xlane.f32.xlu0 %v1647
    %v1649 = vpop.xlane.xlu0 %1648
    %v1650 = vmul.f32 %v1646, %v344
    %v1651 = vmul.f32 %v1649, %v344
    %v1652 = vsub.f32 %v1638, %v1650
    %v1653 = vsub.f32 %v1639, %v1651
    %v1654 = vmul.f32 %v1652, %v1652
    %v1655 = vmul.f32 %v1653, %v1653
    %v1656 = vsel %vm331, %v1654, 0.0
    %1657 = vadd.xlane.f32.xlu0 %v1656
    %v1658 = vpop.xlane.xlu0 %1657
    %v1659 = vsel %vm331, %v1655, 0.0
    %1660 = vadd.xlane.f32.xlu0 %v1659
    %v1661 = vpop.xlane.xlu0 %1660
    %v1662 = vmul.f32 %v1658, %v344
    %v1663 = vmul.f32 %v1661, %v344
    %v1664 = vadd.f32 %v1662, 1e-05
    %v1665 = vadd.f32 %v1663, 1e-05
    %v1666 = vrsqrt.pop %v1664
    %v1667 = vmul.f32 %v1666, %v1664
    %v1668 = vmul.f32 %v1667, %v1666
    %v1669 = vmul.f32 0.5, %v1668
    %v1670 = vsub.f32 1.5, %v1669
    %v1671 = vmul.f32 %v1666, %v1670
    %vm1672 = vweird.f32 %v1664
    %vm1673 = vweird.f32 %v1666
    %vm1674 = vmor %vm1672, %vm1673
    %v1675 = vsel %vm1674, %v1666, %v1671
    %v1676 = vrsqrt.pop %v1665
    %v1677 = vmul.f32 %v1676, %v1665
    %v1678 = vmul.f32 %v1677, %v1676
    %v1679 = vmul.f32 0.5, %v1678
    %v1680 = vsub.f32 1.5, %v1679
    %v1681 = vmul.f32 %v1676, %v1680
    %vm1682 = vweird.f32 %v1665
    %vm1683 = vweird.f32 %v1676
    %vm1684 = vmor %vm1682, %vm1683
    %v1685 = vsel %vm1684, %v1676, %v1681
    %v1686 = vmul.f32 %v1652, %v1675
    %v1687 = vmul.f32 %v1653, %v1685
    %v1689 = vperm.slane %v1641, 0
    %v1691 = vmul.f32 %v1686, %v1689
    %v1692 = vmul.f32 %v1687, %v1689
    %v1694 = vperm.slane %v1643, 0
    %v1696 = vadd.f32 %v1691, %v1694
    %v1697 = vadd.f32 %v1692, %v1694
    %v1698 = vld [vmem:[%s20] sm:$0xff]
    %v1699 = vld [vmem:[%s20 + $0x8] sm:$0xff]
    %v1700 = vld [vmem:[%s20 + $0x10] sm:$0xff]
    %v1701 = vld [vmem:[%s20 + $0x18] sm:$0xff]
    %v1702 = vld [vmem:[%s21] sm:$0x1]
    %v1704 = vperm.slane %v1702, 0
    %v1707 = vsel %vm331, %v1696, 0
    %v1710 = vsel %vm331, %v1697, 0
    %1712 = vmatpush.msra.mxu0 0.0
    %1713 = vmatpush.msra.mxu0 0.0
    %1714 = vmatpush.msra.mxu0 0.0
    %1715 = vmatpush.msra.mxu0 0.0
    %1716 = vmatpush.msra.mxu0 0.0
    %1717 = vmatpush.msra.mxu0 0.0
    %1718 = vmatpush.msra.mxu0 0.0
    %1719 = vmatpush.msra.mxu0 0.0
    %1720 = vmatpush.msra.mxu0 0.0
    %1721 = vmatpush.msra.mxu0 0.0
    %1722 = vmatpush.msra.mxu0 0.0
    %1723 = vmatpush.msra.mxu0 0.0
    %1724 = vmatpush.msra.mxu0 %v1701
    %1725 = vmatpush.msra.mxu0 %v1700
    %1726 = vmatpush.msra.mxu0 %v1699
    %1727 = vmatpush.msra.mxu0 %v1698
    %1728 = vmatmul.f32.gmra.mxu0 %v1707
    %v1729 = vpop.f32.mrf.mxu0
    %v1730 = vadd.f32 %v1704, %v1729
    %1731 = vmatmul.f32.gmra.mxu0 %v1710
    %v1732 = vpop.f32.mrf.mxu0
    %v1733 = vadd.f32 %v1704, %v1732
    %1734 = vdwg.mxu0
    %v1735 = vmul.f32 %v1730, 0.5
    %v1736 = vmul.f32 %v1733, 0.5
    %v1737 = vmul.f32 %v1730, 0.044715
    %v1738 = vmul.f32 %v1733, 0.044715
    %v1739 = vmul.f32 %v1737, %v1730
    %v1740 = vmul.f32 %v1738, %v1733
    %v1741 = vmul.f32 %v1739, %v1730
    %v1742 = vmul.f32 %v1740, %v1733
    %v1743 = vadd.f32 %v1730, %v1741
    %v1744 = vadd.f32 %v1733, %v1742
    %v1745 = vmul.f32 %v1743, 0.7978846
    %v1746 = vmul.f32 %v1744, 0.7978846
    %v1747 = vtanh.pop %v1745
    %v1748 = vtanh.pop %v1746
    %v1749 = vadd.f32 %v1747, 1.0
    %v1750 = vadd.f32 %v1748, 1.0
    %v1751 = vmul.f32 %v1735, %v1749
    %v1752 = vmul.f32 %v1736, %v1750
    %v1753 = vld [vmem:[%s22] sm:$0x1]
    %v1754 = vld [vmem:[%s23] sm:$0x1]
    %v1755 = vsel %vm331, %v1751, 0.0
    %1756 = vadd.xlane.f32.xlu0 %v1755
    %v1757 = vpop.xlane.xlu0 %1756
    %v1758 = vsel %vm331, %v1752, 0.0
    %1759 = vadd.xlane.f32.xlu0 %v1758
    %v1760 = vpop.xlane.xlu0 %1759
    %v1761 = vmul.f32 %v1757, %v344
    %v1762 = vmul.f32 %v1760, %v344
    %v1763 = vsub.f32 %v1751, %v1761
    %v1764 = vsub.f32 %v1752, %v1762
    %v1765 = vmul.f32 %v1763, %v1763
    %v1766 = vmul.f32 %v1764, %v1764
    %v1767 = vsel %vm331, %v1765, 0.0
    %1768 = vadd.xlane.f32.xlu0 %v1767
    %v1769 = vpop.xlane.xlu0 %1768
    %v1770 = vsel %vm331, %v1766, 0.0
    %1771 = vadd.xlane.f32.xlu0 %v1770
    %v1772 = vpop.xlane.xlu0 %1771
    %v1773 = vmul.f32 %v1769, %v344
    %v1774 = vmul.f32 %v1772, %v344
    %v1775 = vadd.f32 %v1773, 1e-10
    %v1776 = vadd.f32 %v1774, 1e-10
    %v1777 = vrsqrt.pop %v1775
    %v1778 = vmul.f32 %v1777, %v1775
    %v1779 = vmul.f32 %v1778, %v1777
    %v1780 = vmul.f32 0.5, %v1779
    %v1781 = vsub.f32 1.5, %v1780
    %v1782 = vmul.f32 %v1777, %v1781
    %vm1783 = vweird.f32 %v1775
    %vm1784 = vweird.f32 %v1777
    %vm1785 = vmor %vm1783, %vm1784
    %v1786 = vsel %vm1785, %v1777, %v1782
    %v1787 = vrsqrt.pop %v1776
    %v1788 = vmul.f32 %v1787, %v1776
    %v1789 = vmul.f32 %v1788, %v1787
    %v1790 = vmul.f32 0.5, %v1789
    %v1791 = vsub.f32 1.5, %v1790
    %v1792 = vmul.f32 %v1787, %v1791
    %vm1793 = vweird.f32 %v1776
    %vm1794 = vweird.f32 %v1787
    %vm1795 = vmor %vm1793, %vm1794
    %v1796 = vsel %vm1795, %v1787, %v1792
    %v1797 = vmul.f32 %v1763, %v1786
    %v1798 = vmul.f32 %v1764, %v1796
    %v1800 = vperm.slane %v1753, 0
    %v1802 = vmul.f32 %v1797, %v1800
    %v1803 = vmul.f32 %v1798, %v1800
    %v1805 = vperm.slane %v1754, 0
    %v1807 = vadd.f32 %v1802, %v1805
    %v1808 = vadd.f32 %v1803, %v1805
    %v1809 = vld [vmem:[%s24] sm:$0xff]
    %v1810 = vld [vmem:[%s24 + $0x8] sm:$0xff]
    %v1811 = vld [vmem:[%s24 + $0x10] sm:$0xff]
    %v1812 = vld [vmem:[%s24 + $0x18] sm:$0xff]
    %v1813 = vld [vmem:[%s25] sm:$0x1]
    %v1815 = vperm.slane %v1813, 0
    %v1818 = vsel %vm331, %v1807, 0
    %v1821 = vsel %vm331, %v1808, 0
    %1823 = vmatpush.msra.mxu0 0.0
    %1824 = vmatpush.msra.mxu0 0.0
    %1825 = vmatpush.msra.mxu0 0.0
    %1826 = vmatpush.msra.mxu0 0.0
    %1827 = vmatpush.msra.mxu0 0.0
    %1828 = vmatpush.msra.mxu0 0.0
    %1829 = vmatpush.msra.mxu0 0.0
    %1830 = vmatpush.msra.mxu0 0.0
    %1831 = vmatpush.msra.mxu0 0.0
    %1832 = vmatpush.msra.mxu0 0.0
    %1833 = vmatpush.msra.mxu0 0.0
    %1834 = vmatpush.msra.mxu0 0.0
    %1835 = vmatpush.msra.mxu0 %v1812
    %1836 = vmatpush.msra.mxu0 %v1811
    %1837 = vmatpush.msra.mxu0 %v1810
    %1838 = vmatpush.msra.mxu0 %v1809
    %1839 = vmatmul.f32.gmra.mxu0 %v1818
    %v1840 = vpop.f32.mrf.mxu0
    %v1841 = vadd.f32 %v1815, %v1840
    %1842 = vmatmul.f32.gmra.mxu0 %v1821
    %v1843 = vpop.f32.mrf.mxu0
    %v1844 = vadd.f32 %v1815, %v1843
    %1845 = vdwg.mxu0
    %1846 = vst [vmem:[#allocation2] sm:$0xff] %v1841
    %1847 = vst [vmem:[#allocation2 + $0x8] sm:$0xff] %v1844
    // Predicated region
    $region106: #{bert_mlm_forward.1} parent=1 // pred_check
      _
    $region107: #{bert_mlm_forward.1} parent=1 // pred_check_branch
      %1849 = sbr.rel (0) target = $region109
    $region108: #{bert_mlm_forward.1} parent=1 // pred_region
      %1851 = vsyncadd [#allocation3], 0
      %s1852 = sshll.u32 [#allocation2], 4
      %s1853 = int_to_ptr.vmem [resolvable:$true] %s1852
      %s1854 = sshll.u32 %s26, 4
      %s1855 = int_to_ptr.hbm [resolvable:$true] %s1854
      %1860 = dma.vmem_to_hbm [thread:$0]  %s1853, 256, %s1855, [#allocation3], 128, 128, 8
    $region109: #{bert_mlm_forward.1} parent=1 // pred_fallthru
      _
    // Predicated region
    $region110: #{bert_mlm_forward.1} parent=1 // pred_check
      _
    $region111: #{bert_mlm_forward.1} parent=1 // pred_check_branch
      %1862 = sbr.rel (0) target = $region113
    $region112: #{bert_mlm_forward.1} parent=1 // pred_region
      %1864 = dma.done [#allocation3], 256
    $region113: #{bert_mlm_forward.1} parent=1 // pred_fallthru
      _
    %1865 = vsyncpa [#allocation3], 1

</llo_original>
